<compile_context>
chip_gen: v7x
topology: tpu7x:2x2x1
jax: 0.10.0
libtpu: 0.0.40
codegen_flags: <defaults>
</compile_context>

<pallas_src>
import math

import jax
import jax.numpy as jnp
from jax.experimental import pallas as pl
from jax.experimental.pallas import tpu as pltpu


# ----------------------- rigid transform helpers (glue) -----------------------

def warp_3d_point(T, p):
    """Apply rigid transform T (..., 4, 4) to points p (..., 3) with broadcasting."""
    R = T[..., :3, :3]
    t = T[..., :3, 3]
    return jnp.einsum('...ij,...j->...i', R, p) + t


def invert_4x4_transform(T):
    R = T[..., :3, :3]
    t = T[..., :3, 3]
    Rinv = jnp.swapaxes(R, -1, -2)
    tinv = -jnp.einsum('...ij,...j->...i', Rinv, t)
    Tinv = jnp.zeros_like(T)
    Tinv = Tinv.at[..., :3, :3].set(Rinv)
    Tinv = Tinv.at[..., :3, 3].set(tinv)
    Tinv = Tinv.at[..., 3, 3].set(1.0)
    return Tinv


def linear(x, w, b):
    # torch.nn.Linear semantics: y = x @ W^T + b, W has shape (out, in)
    return jnp.dot(x, w.T) + b


def _round_up(x, m):
    return ((x + m - 1) // m) * m


# --------------------------- Pallas attention core ----------------------------

def ipa_flash_kernel(lhs_ref, rhs_ref, vvp_ref, bias_ref, z_ref, out_ref,
                     m_scr, l_scr, acc_scr):
    """One (batch, q-tile) accumulation step over one k-tile, ALL heads folded.

    lhs_ref  : (1,H,tq,KD)   f32  [wl/sqrt(c)*q | tqp | -coef*|tqp|^2 | 1]
    rhs_ref  : (1,H,tk,KD)   f32  [k | 2*coef*tkp | 1 | -coef*|tkp|^2]
    vvp_ref  : (1,H,tk,VDp)  bf16 [v | tvp | 0-pad to 128 lanes]
    bias_ref : (1,H,tq,tk)   f32  wl*(z@wb^T + bb), padded key cols = -1e30
    z_ref    : (1,tq,tk,CZ)  bf16 pair representation tile (shared by all heads)
    out_ref  : (1,H,tq,ODp)       [out_v | out_vp | pad || out_pair | pad]
    """
    j = pl.program_id(2)
    H = lhs_ref.shape[1]
    vdp = vvp_ref.shape[-1]          # 128-lane-aligned value segment
    cz = z_ref.shape[-1]

    @pl.when(j == 0)
    def _init():
        m_scr[...] = jnp.full_like(m_scr, -1e30)
        l_scr[...] = jnp.zeros_like(l_scr)
        acc_scr[...] = jnp.zeros_like(acc_scr)

    # --- fused logits: one head-batched MXU matmul + precomputed bias tile ---
    # (kept f32: the squared-distance expansion columns would lose too much
    #  precision in bf16 -- reviewer correctness concern #1).
    s = jnp.einsum('hqd,hkd->hqk', lhs_ref[0], rhs_ref[0],
                   preferred_element_type=jnp.float32)          # (H, tq, tk)
    s = s + bias_ref[0]          # mask for padded keys already folded in (-1e30)

    # --- online softmax update (flash style), per head ---
    m_prev = m_scr[...]                                          # (H, tq, 1)
    m_new = jnp.maximum(m_prev, jnp.max(s, axis=-1, keepdims=True))
    alpha = jnp.exp(m_prev - m_new)
    p = jnp.exp(s - m_new)                                       # (H, tq, tk) f32
    m_scr[...] = m_new
    l_scr[...] = alpha * l_scr[...] + jnp.sum(p, axis=-1, keepdims=True)

    # --- value + point-value aggregation: one head-batched bf16 MXU matmul ---
    p_s = p.astype(vvp_ref.dtype)
    av = jnp.einsum('hqk,hkd->hqd', p_s, vvp_ref[0],
                    preferred_element_type=jnp.float32)          # (H, tq, VDp)
    acc_scr[:, :, :vdp] = alpha * acc_scr[:, :, :vdp] + av       # lane-aligned slice

    # --- pair aggregation against the SHARED z tile (VPU multiply, f32 acc) ---
    # TODO(synk): at production sizes chunk this over the tk (sublane) axis so
    # the (tq,tk,CZ) product never exceeds the vreg budget.
    z = z_ref[0]                                                 # (tq, tk, CZ)
    for h in range(H):   # static unroll; H is small (4..12)
        ap_h = jnp.sum(p_s[h][:, :, None] * z, axis=1, dtype=jnp.float32)
        acc_scr[h, :, vdp:vdp + cz] = (alpha[h] * acc_scr[h, :, vdp:vdp + cz]
                                       + ap_h)

    @pl.when(j == pl.num_programs(2) - 1)
    def _finalize():
        l = l_scr[...]
        inv = pl.reciprocal(l, approx=True)        # EUP slot
        inv = inv * (2.0 - l * inv)                # one Newton step -> ~f32 accurate
        out_ref[0] = (acc_scr[...] * inv).astype(out_ref.dtype)  # lane-dense store


# ------------------------------ model (glue) ----------------------------------

def prepare_qkv(params, s, cfg):
    B, N, _ = s.shape
    H, C = cfg['N_head'], cfg['c']
    PQ, PV = cfg['n_query_points'], cfg['n_point_values']

    q = linear(s, params['wq'], params['bq']).reshape(B, N, H, C)
    k = linear(s, params['wk'], params['bk']).reshape(B, N, H, C)
    v = linear(s, params['wv'], params['bv']).reshape(B, N, H, C)
    q = jnp.swapaxes(q, 1, 2)   # (B, H, N, C)
    k = jnp.swapaxes(k, 1, 2)
    v = jnp.swapaxes(v, 1, 2)

    def pts(w, b, P):
        p = linear(s, w, b).reshape(B, N, 3, H, P)
        p = jnp.moveaxis(p, 2, -1)   # (B, N, H, P, 3)
        p = jnp.moveaxis(p, 1, -2)   # (B, H, P, N, 3)
        return p

    qp = pts(params['wqp'], params['bqp'], PQ)
    kp = pts(params['wkp'], params['bkp'], PQ)
    vp = pts(params['wvp'], params['bvp'], PV)
    return q, k, v, qp, kp, vp


def ipa_forward_pallas(params, s, z, T, cfg, *, tile_q=None, tile_k=None,
                       stream_dtype=jnp.bfloat16):
    B, N, _ = s.shape
    H, C = cfg['N_head'], cfg['c']
    PQ, PV, CZ = cfg['n_query_points'], cfg['n_point_values'], cfg['c_z']
    PQ3, PV3 = 3 * PQ, 3 * PV
    KD = C + PQ3 + 2                       # fused logits contraction depth
    VD = C + PV3                           # [v | tvp] width
    VDp = _round_up(VD, 128)               # 128-lane aligned value segment
    ODp = VDp + _round_up(CZ, 128)         # 128-lane aligned fused output width

    if tile_q is None:
        tile_q = min(128, _round_up(N, 8))
    if tile_k is None:
        tile_k = min(128, _round_up(N, 8))
    n_pad = _round_up(N, (tile_q * tile_k) // math.gcd(tile_q, tile_k))

    if tile_q % 8 != 0:
        raise ValueError("tile_q must be a multiple of 8")
    if tile_k % 128 != 0 and tile_k != n_pad:
        # bias block's last (lane) dim is tile_k: keep it 128-aligned or full.
        raise ValueError("tile_k must be a multiple of 128 or cover the full "
                         "(padded) key axis")

    q, k, v, qp, kp, vp = prepare_qkv(params, s, cfg)

    wl = math.sqrt(1.0 / 3.0)
    wc = math.sqrt(2.0 / (9.0 * PQ))
    # coef already includes wl -> logits need no extra scale in-kernel.
    coef = jax.nn.softplus(params['head_weights']) * (wc * 0.5 * wl)     # (H,)
    coef_b = coef.reshape(1, H, 1, 1).astype(jnp.float32)

    # warp points into the global frame
    T_batch = T.reshape(B, 1, 1, N, 4, 4)
    tqp = warp_3d_point(T_batch, qp)            # (B, H, PQ, N, 3)
    tkp = warp_3d_point(T_batch, kp)
    tvp = warp_3d_point(T_batch, vp)            # (B, H, PV, N, 3)

    # Center q/k point clouds per batch (squared distances are translation
    # invariant) to avoid cancellation in the |q|^2+|k|^2-2q.k expansion.
    ctr = jnp.mean(T[..., :3, 3], axis=1).reshape(B, 1, 1, 1, 3)
    tqp = tqp - ctr
    tkp = tkp - ctr

    def flat(p, P):
        return jnp.transpose(p, (0, 1, 3, 2, 4)).reshape(B, H, N, P * 3)

    tqp_f, tkp_f, tvp_f = flat(tqp, PQ), flat(tkp, PQ), flat(tvp, PV)

    qsq = jnp.sum(tqp_f * tqp_f, axis=-1, keepdims=True)               # (B,H,N,1)
    ksq = jnp.sum(tkp_f * tkp_f, axis=-1, keepdims=True)
    ones = jnp.ones((B, H, N, 1), jnp.float32)

    # Fused MXU operands (kept f32 -- carry the distance-expansion columns):
    #   lhs_i . rhs_j = wl*q.k/sqrt(c) + 2*coef*tqp.tkp - coef*(|tqp_i|^2+|tkp_j|^2)
    lhs = jnp.concatenate(
        [q * (wl / math.sqrt(C)), tqp_f, -coef_b * qsq, ones], axis=-1)   # (B,H,N,KD)
    rhs = jnp.concatenate(
        [k, 2.0 * coef_b * tkp_f, ones, -coef_b * ksq], axis=-1)          # (B,H,N,KD)
    vvp = jnp.concatenate([v, tvp_f], axis=-1)                            # (B,H,N,VD)

    # Pair bias wl*(z@wb^T + bb) precomputed once (MXU matmul in XLA); the
    # key-padding mask is folded in as -1e30 so the kernel never masks.
    bias = wl * (jnp.einsum('bijc,hc->bhij', z, params['wb'])
                 + params['bb'].reshape(1, H, 1, 1))
    bias = jnp.pad(bias, ((0, 0), (0, 0), (0, 0), (0, n_pad - N)),
                   constant_values=-1e30)
    bias = jnp.pad(bias, ((0, 0), (0, 0), (0, n_pad - N), (0, 0)))
    bias = bias.astype(jnp.float32)

    def pad_to(x, axis, size):
        pads = [(0, 0)] * x.ndim
        pads[axis] = (0, size - x.shape[axis])
        return jnp.pad(x, pads)

    lhs_p = pad_to(lhs.astype(jnp.float32), 2, n_pad)
    rhs_p = pad_to(rhs.astype(jnp.float32), 2, n_pad)
    # bf16 streaming of the heavy operands (value/pair paths); f32 accumulation
    # inside the kernel.
    vvp_p = pad_to(pad_to(vvp, 3, VDp), 2, n_pad).astype(stream_dtype)
    z_p = pad_to(pad_to(z, 1, n_pad), 2, n_pad).astype(stream_dtype)

    per_q = lambda b, i, j: (b, 0, i, 0)
    per_k = lambda b, i, j: (b, 0, j, 0)

    grid = (B, n_pad // tile_q, n_pad // tile_k)
    grid_spec = pltpu.PrefetchScalarGridSpec(
        num_scalar_prefetch=0,
        grid=grid,
        in_specs=[
            pl.BlockSpec((1, H, tile_q, KD), per_q),                        # fused q
            pl.BlockSpec((1, H, tile_k, KD), per_k),                        # fused k
            pl.BlockSpec((1, H, tile_k, VDp), per_k),                       # [v|tvp]
            pl.BlockSpec((1, H, tile_q, tile_k),
                         lambda b, i, j: (b, 0, i, j)),                     # bias
            pl.BlockSpec((1, tile_q, tile_k, CZ),
                         lambda b, i, j: (b, i, j, 0)),                     # z tile
        ],
        out_specs=pl.BlockSpec((1, H, tile_q, ODp), per_q),
        scratch_shapes=[
            pltpu.VMEM((H, tile_q, 1), jnp.float32),     # running max
            pltpu.VMEM((H, tile_q, 1), jnp.float32),     # running denominator
            pltpu.VMEM((H, tile_q, ODp), jnp.float32),   # fused accumulator
        ],
    )

    # Size the VMEM limit from the actual block budget (double-buffered inputs
    # + resident output + scratch) instead of a flat 48 MiB (v7x has 64 MiB).
    def nbytes(shape, dt):
        n = 1
        for d in shape:
            n *= d
        return n * jnp.dtype(dt).itemsize

    block_bytes = (nbytes((1, H, tile_q, KD), jnp.float32)
                   + nbytes((1, H, tile_k, KD), jnp.float32)
                   + nbytes((1, H, tile_k, VDp), stream_dtype)
                   + nbytes((1, H, tile_q, tile_k), jnp.float32)
                   + nbytes((1, tile_q, tile_k, CZ), stream_dtype)
                   + nbytes((1, H, tile_q, ODp), jnp.float32))
    scratch_bytes = (nbytes((H, tile_q, ODp), jnp.float32)
                     + 2 * nbytes((H, tile_q, 1), jnp.float32))
    vmem_limit = int(min(max(2 * block_bytes + scratch_bytes + (8 << 20),
                             32 << 20), 100 << 20))

    out = pl.pallas_call(
        ipa_flash_kernel,
        grid_spec=grid_spec,
        out_shape=jax.ShapeDtypeStruct((B, H, n_pad, ODp), jnp.float32),
        compiler_params=pltpu.CompilerParams(
            dimension_semantics=("parallel", "parallel", "arbitrary"),
            vmem_limit_bytes=vmem_limit),
    )(lhs_p, rhs_p, vvp_p, bias, z_p)

    # slice the fused, lane-dense output block and drop padded query rows
    out = out[:, :, :N, :]
    out_v = out[..., :C]                           # (B, H, N, C)
    out_vp_f = out[..., C:C + PV3]                 # (B, H, N, PV*3)
    out_pair = out[..., VDp:VDp + CZ]              # (B, H, N, CZ)

    out_values = jnp.transpose(out_v, (0, 2, 1, 3)).reshape(B, N, H * C)
    out_pairwise = jnp.transpose(out_pair, (0, 2, 1, 3)).reshape(B, N, H * CZ)

    ovp_global = jnp.transpose(out_vp_f.reshape(B, H, N, PV, 3),
                               (0, 1, 3, 2, 4))                   # (B, H, PV, N, 3)
    T_batch_inv = invert_4x4_transform(T_batch)
    ovp_local = warp_3d_point(T_batch_inv, ovp_global)            # (B, H, PV, N, 3)
    ovp_local = jnp.einsum('bhpic->bichp', ovp_local)             # (B, N, 3, H, PV)
    onorm = jnp.linalg.norm(ovp_local, axis=-3, keepdims=True)    # (B, N, 1, H, PV)

    cat = jnp.concatenate(
        [out_values,
         ovp_local.reshape(B, N, 3 * H * PV),
         onorm.reshape(B, N, H * PV),
         out_pairwise], axis=-1)
    return linear(cat, params['wout'], params['bout'])


# --------------------------- pure-JAX reference --------------------------------

def ipa_forward_reference(params, s, z, T, cfg):
    B, N, _ = s.shape
    H, C = cfg['N_head'], cfg['c']
    PQ, PV, CZ = cfg['n_query_points'], cfg['n_point_values'], cfg['c_z']

    q, k, v, qp, kp, vp = prepare_qkv(params, s, cfg)
    wc = math.sqrt(2.0 / (9.0 * PQ))
    wl = math.sqrt(1.0 / 3.0)
    gamma = jax.nn.softplus(params['head_weights']).reshape(-1, 1, 1)
    bias = jnp.moveaxis(linear(z, params['wb'], params['bb']), -1, -3)
    qk = jnp.einsum('bhic,bhjc->bhij', q, k)
    T_batch = T.reshape(B, 1, 1, N, 4, 4)
    T_qp = warp_3d_point(T_batch, qp)[..., :, None, :]
    T_kp = warp_3d_point(T_batch, kp)[..., None, :, :]
    sq_dist = jnp.sum((T_qp - T_kp) ** 2, axis=-1)
    sq_dist_sum = jnp.sum(sq_dist, axis=-3)
    extra = gamma * wc / 2.0 * sq_dist_sum
    a = jax.nn.softmax(wl * (qk / math.sqrt(C) + bias - extra), axis=-1)

    out_pairwise = jnp.einsum('bhij,bijc->bihc', a, z).reshape(B, N, H * CZ)
    out_values = jnp.einsum('bhij,bhjc->bihc', a, v).reshape(B, N, H * C)
    T_batch_inv = invert_4x4_transform(T_batch)
    ovp = jnp.einsum('bhij,bhpjc->bhpic', a, warp_3d_point(T_batch, vp))
    ovp = warp_3d_point(T_batch_inv, ovp)
    ovp = jnp.einsum('bhpic->bichp', ovp)
    onorm = jnp.linalg.norm(ovp, axis=-3, keepdims=True)
    cat = jnp.concatenate([out_values, ovp.reshape(B, N, -1),
                           onorm.reshape(B, N, -1), out_pairwise], axis=-1)
    return linear(cat, params['wout'], params['bout'])


# --------------------------------- params --------------------------------------

def init_params(key, cfg):
    c_s, c_z = cfg['c_s'], cfg['c_z']
    H, C = cfg['N_head'], cfg['c']
    PQ, PV = cfg['n_query_points'], cfg['n_point_values']
    keys = jax.random.split(key, 17)

    def w(k, shape, scale=0.1):
        return (scale * jax.random.normal(k, shape)).astype(jnp.float32)

    return {
        'wq': w(keys[0], (C * H, c_s)), 'bq': w(keys[1], (C * H,)),
        'wk': w(keys[2], (C * H, c_s)), 'bk': w(keys[3], (C * H,)),
        'wv': w(keys[4], (C * H, c_s)), 'bv': w(keys[5], (C * H,)),
        'wqp': w(keys[6], (PQ * 3 * H, c_s)), 'bqp': w(keys[7], (PQ * 3 * H,)),
        'wkp': w(keys[8], (PQ * 3 * H, c_s)), 'bkp': w(keys[9], (PQ * 3 * H,)),
        'wvp': w(keys[10], (PV * 3 * H, c_s)), 'bvp': w(keys[11], (PV * 3 * H,)),
        'wb': w(keys[12], (H, c_z)), 'bb': w(keys[13], (H,)),
        'wout': w(keys[14], (c_s, c_z * H + C * H + PV * 3 * H + PV * H)),
        'bout': w(keys[15], (c_s,)),
        'head_weights': w(keys[16], (H,), scale=0.5),
    }


# ---------------------------------- main ----------------------------------------

if __name__ == "__main__":
    cfg = dict(c_s=32, c_z=8, N_head=4, c=8, n_query_points=4, n_point_values=8)
    key = jax.random.PRNGKey(0)
    kparam, kdata = jax.random.split(key)
    params = init_params(kparam, cfg)

    def make_inputs(k, B, N):
        ks, kz, kr, kt = jax.random.split(k, 4)
        s = jax.random.normal(ks, (B, N, cfg['c_s']), dtype=jnp.float32)
        z = jax.random.normal(kz, (B, N, N, cfg['c_z']), dtype=jnp.float32)
        A = jax.random.normal(kr, (B, N, 3, 3), dtype=jnp.float32)
        Q, _ = jnp.linalg.qr(A)
        t = jax.random.normal(kt, (B, N, 3), dtype=jnp.float32)
        T = jnp.zeros((B, N, 4, 4), dtype=jnp.float32)
        T = T.at[..., :3, :3].set(Q).at[..., :3, 3].set(t).at[..., 3, 3].set(1.0)
        return s, z, T

    ka, kb = jax.random.split(kdata)

    # --- Test A: tiny shapes, f32 streaming, tight tolerance.
    # Exercises q-axis tiling (2 q-tiles), padded key columns (masked via the
    # precomputed bias) and padded query rows.
    s, z, T = make_inputs(ka, B=2, N=13)
    out = jax.block_until_ready(
        ipa_forward_pallas(params, s, z, T, cfg, tile_q=8, tile_k=16,
                           stream_dtype=jnp.float32))
    ref = jax.block_until_ready(ipa_forward_reference(params, s, z, T, cfg))
    assert out.shape == s.shape, (out.shape, s.shape)
    err_a = float(jnp.max(jnp.abs(out - ref)))
    assert err_a < 2e-3, f"f32 path max abs err {err_a}"

    # --- Test B: multi-k-tile online softmax with bf16 streaming of z and
    # [v|tvp] (the production dtype path).  Tolerance is wider because the
    # value/pair streams are bf16; the logits path stays f32.
    s, z, T = make_inputs(kb, B=1, N=140)
    out = jax.block_until_ready(
        ipa_forward_pallas(params, s, z, T, cfg))   # defaults: 128x128 tiles, bf16
    ref = jax.block_until_ready(ipa_forward_reference(params, s, z, T, cfg))
    assert out.shape == s.shape, (out.shape, s.shape)
    err_b = float(jnp.max(jnp.abs(out - ref)))
    assert err_b < 5e-2, f"bf16 path max abs err {err_b}"

    print("KERNEL_OK")
</pallas_src>

<mosaic_0001>
module attributes {stable_mosaic.version = 11 : i64} {
  func.func @ipa_flash_kernel(%arg0: i32, %arg1: i32, %arg2: i32, %arg3: memref<1x4x8x22xf32, #tpu.memory_space<vmem>>, %arg4: memref<1x4x16x22xf32, #tpu.memory_space<vmem>>, %arg5: memref<1x4x16x128xf32, #tpu.memory_space<vmem>>, %arg6: memref<1x4x8x16xf32, #tpu.memory_space<vmem>>, %arg7: memref<1x8x16x8xf32, #tpu.memory_space<vmem>>, %arg8: memref<1x4x8x256xf32, #tpu.memory_space<vmem>>, %arg9: memref<4x8x1xf32, #tpu.memory_space<vmem>>, %arg10: memref<4x8x1xf32, #tpu.memory_space<vmem>>, %arg11: memref<4x8x256xf32, #tpu.memory_space<vmem>>) attributes {dimension_semantics = [#tpu.dimension_semantics<parallel>, #tpu.dimension_semantics<parallel>, #tpu.dimension_semantics<arbitrary>], iteration_bounds = array<i64: 2, 2, 1>, scalar_prefetch = 0 : i64, scratch_operands = 3 : i64, tpu.core_type = #tpu.core_type<tc>, window_params = [{transform_indices = @transform_0, window_bounds = array<i64: 1, 4, 8, 22>}, {transform_indices = @transform_1, window_bounds = array<i64: 1, 4, 16, 22>}, {transform_indices = @transform_2, window_bounds = array<i64: 1, 4, 16, 128>}, {transform_indices = @transform_3, window_bounds = array<i64: 1, 4, 8, 16>}, {transform_indices = @transform_4, window_bounds = array<i64: 1, 8, 16, 8>}, {transform_indices = @transform_5, window_bounds = array<i64: 1, 4, 8, 256>}]} {
    %c0_i32 = arith.constant 0 : i32
    %0 = arith.cmpi eq, %arg2, %c0_i32 : i32
    %1 = arith.extui %0 : i1 to i32
    %c0_i32_0 = arith.constant 0 : i32
    %2 = arith.cmpi ne, %1, %c0_i32_0 : i32
    scf.if %2 {
      %cst_67 = arith.constant -1.000000e+30 : f32
      %104 = vector.broadcast %cst_67 : f32 to vector<4x8x1xf32>
      %c0_68 = arith.constant 0 : index
      %c0_69 = arith.constant 0 : index
      %c0_70 = arith.constant 0 : index
      %105 = vector.load %arg9[%c0_68, %c0_69, %c0_70] : memref<4x8x1xf32, #tpu.memory_space<vmem>>, vector<4x8x1xf32>
      tpu.vector_store %arg9[%c0_68, %c0_69, %c0_70], %104 {strides = array<i32>} : memref<4x8x1xf32, #tpu.memory_space<vmem>>, vector<4x8x1xf32>,
      %cst_71 = arith.constant 0.000000e+00 : f32
      %106 = vector.broadcast %cst_71 : f32 to vector<4x8x1xf32>
      %c0_72 = arith.constant 0 : index
      %c0_73 = arith.constant 0 : index
      %c0_74 = arith.constant 0 : index
      %107 = vector.load %arg10[%c0_72, %c0_73, %c0_74] : memref<4x8x1xf32, #tpu.memory_space<vmem>>, vector<4x8x1xf32>
      tpu.vector_store %arg10[%c0_72, %c0_73, %c0_74], %106 {strides = array<i32>} : memref<4x8x1xf32, #tpu.memory_space<vmem>>, vector<4x8x1xf32>,
      %cst_75 = arith.constant 0.000000e+00 : f32
      %108 = vector.broadcast %cst_75 : f32 to vector<4x8x256xf32>
      %c0_76 = arith.constant 0 : index
      %c0_77 = arith.constant 0 : index
      %c0_78 = arith.constant 0 : index
      %109 = vector.load %arg11[%c0_76, %c0_77, %c0_78] : memref<4x8x256xf32, #tpu.memory_space<vmem>>, vector<4x8x256xf32>
      tpu.vector_store %arg11[%c0_76, %c0_77, %c0_78], %108 {strides = array<i32>} : memref<4x8x256xf32, #tpu.memory_space<vmem>>, vector<4x8x256xf32>,
    } else {
    }
    %c0 = arith.constant 0 : index
    %c0_1 = arith.constant 0 : index
    %c0_2 = arith.constant 0 : index
    %c0_3 = arith.constant 0 : index
    %3 = vector.load %arg3[%c0, %c0_1, %c0_2, %c0_3] : memref<1x4x8x22xf32, #tpu.memory_space<vmem>>, vector<1x4x8x22xf32>
    %4 = vector.shape_cast %3 : vector<1x4x8x22xf32> to vector<4x8x22xf32>
    %c0_4 = arith.constant 0 : index
    %c0_5 = arith.constant 0 : index
    %c0_6 = arith.constant 0 : index
    %c0_7 = arith.constant 0 : index
    %5 = vector.load %arg4[%c0_4, %c0_5, %c0_6, %c0_7] : memref<1x4x16x22xf32, #tpu.memory_space<vmem>>, vector<1x4x16x22xf32>
    %6 = vector.shape_cast %5 : vector<1x4x16x22xf32> to vector<4x16x22xf32>
    "tpu.trace_start"() <{level = 10 : i32, message = "hqd,hkd->hqk"}> : () -> ()
    %cst = arith.constant dense<0.000000e+00> : vector<4x8x16xf32>
    %7 = tpu.matmul %4, %6, %cst {dimension_numbers = #tpu.dot_dimension_numbers<[2], [2], [1], [1], [0, 0, 0, 1, 1, 1], [0], [0]>} : vector<4x8x22xf32>, vector<4x16x22xf32>, vector<4x8x16xf32> -> vector<4x8x16xf32>
    "tpu.trace_stop"() : () -> ()
    %c0_8 = arith.constant 0 : index
    %c0_9 = arith.constant 0 : index
    %c0_10 = arith.constant 0 : index
    %c0_11 = arith.constant 0 : index
    %8 = vector.load %arg6[%c0_8, %c0_9, %c0_10, %c0_11] : memref<1x4x8x16xf32, #tpu.memory_space<vmem>>, vector<1x4x8x16xf32>
    %9 = vector.shape_cast %8 : vector<1x4x8x16xf32> to vector<4x8x16xf32>
    %10 = arith.addf %7, %9 : vector<4x8x16xf32>
    %c0_12 = arith.constant 0 : index
    %c0_13 = arith.constant 0 : index
    %c0_14 = arith.constant 0 : index
    %11 = vector.load %arg9[%c0_12, %c0_13, %c0_14] : memref<4x8x1xf32, #tpu.memory_space<vmem>>, vector<4x8x1xf32>
    %cst_15 = arith.constant dense<0xFF800000> : vector<4x8xf32>
    %12 = vector.multi_reduction <maximumf>, %10, %cst_15 [2] : vector<4x8x16xf32> to vector<4x8xf32>
    %13 = vector.shape_cast %12 : vector<4x8xf32> to vector<4x8x1xf32>
    %14 = arith.maximumf %11, %13 : vector<4x8x1xf32>
    %15 = arith.subf %11, %14 : vector<4x8x1xf32>
    %16 = math.exp %15 : vector<4x8x1xf32>
    %17 = vector.broadcast %14 : vector<4x8x1xf32> to vector<4x8x16xf32>
    %18 = arith.subf %10, %17 : vector<4x8x16xf32>
    %19 = math.exp %18 : vector<4x8x16xf32>
    %c0_16 = arith.constant 0 : index
    %c0_17 = arith.constant 0 : index
    %c0_18 = arith.constant 0 : index
    %20 = vector.load %arg9[%c0_16, %c0_17, %c0_18] : memref<4x8x1xf32, #tpu.memory_space<vmem>>, vector<4x8x1xf32>
    tpu.vector_store %arg9[%c0_16, %c0_17, %c0_18], %14 {strides = array<i32>} : memref<4x8x1xf32, #tpu.memory_space<vmem>>, vector<4x8x1xf32>,
    %c0_19 = arith.constant 0 : index
    %c0_20 = arith.constant 0 : index
    %c0_21 = arith.constant 0 : index
    %21 = vector.load %arg10[%c0_19, %c0_20, %c0_21] : memref<4x8x1xf32, #tpu.memory_space<vmem>>, vector<4x8x1xf32>
    %22 = arith.mulf %16, %21 : vector<4x8x1xf32>
    %cst_22 = arith.constant dense<0.000000e+00> : vector<4x8xf32>
    %23 = vector.multi_reduction <add>, %19, %cst_22 [2] : vector<4x8x16xf32> to vector<4x8xf32>
    %24 = vector.shape_cast %23 : vector<4x8xf32> to vector<4x8x1xf32>
    %25 = arith.addf %22, %24 : vector<4x8x1xf32>
    %c0_23 = arith.constant 0 : index
    %c0_24 = arith.constant 0 : index
    %c0_25 = arith.constant 0 : index
    %26 = vector.load %arg10[%c0_23, %c0_24, %c0_25] : memref<4x8x1xf32, #tpu.memory_space<vmem>>, vector<4x8x1xf32>
    tpu.vector_store %arg10[%c0_23, %c0_24, %c0_25], %25 {strides = array<i32>} : memref<4x8x1xf32, #tpu.memory_space<vmem>>, vector<4x8x1xf32>,
    %c0_26 = arith.constant 0 : index
    %c0_27 = arith.constant 0 : index
    %c0_28 = arith.constant 0 : index
    %c0_29 = arith.constant 0 : index
    %27 = vector.load %arg5[%c0_26, %c0_27, %c0_28, %c0_29] : memref<1x4x16x128xf32, #tpu.memory_space<vmem>>, vector<1x4x16x128xf32>
    %28 = vector.shape_cast %27 : vector<1x4x16x128xf32> to vector<4x16x128xf32>
    "tpu.trace_start"() <{level = 10 : i32, message = "hqk,hkd->hqd"}> : () -> ()
    %cst_30 = arith.constant dense<0.000000e+00> : vector<4x8x128xf32>
    %29 = tpu.matmul %19, %28, %cst_30 {dimension_numbers = #tpu.dot_dimension_numbers<[2], [1], [1], [2], [0, 0, 0, 1, 1, 2], [0], [0]>} : vector<4x8x16xf32>, vector<4x16x128xf32>, vector<4x8x128xf32> -> vector<4x8x128xf32>
    "tpu.trace_stop"() : () -> ()
    %c0_31 = arith.constant 0 : index
    %c0_32 = arith.constant 0 : index
    %c0_33 = arith.constant 0 : index
    %30 = vector.load %arg11[%c0_31, %c0_32, %c0_33] : memref<4x8x256xf32, #tpu.memory_space<vmem>>, vector<4x8x128xf32>
    %31 = vector.broadcast %16 : vector<4x8x1xf32> to vector<4x8x128xf32>
    %32 = arith.mulf %31, %30 : vector<4x8x128xf32>
    %33 = arith.addf %32, %29 : vector<4x8x128xf32>
    %c0_34 = arith.constant 0 : index
    %c0_35 = arith.constant 0 : index
    %c0_36 = arith.constant 0 : index
    %34 = vector.load %arg11[%c0_34, %c0_35, %c0_36] : memref<4x8x256xf32, #tpu.memory_space<vmem>>, vector<4x8x128xf32>
    tpu.vector_store %arg11[%c0_34, %c0_35, %c0_36], %33 {strides = array<i32>} : memref<4x8x256xf32, #tpu.memory_space<vmem>>, vector<4x8x128xf32>,
    %c0_37 = arith.constant 0 : index
    %c0_38 = arith.constant 0 : index
    %c0_39 = arith.constant 0 : index
    %c0_40 = arith.constant 0 : index
    %35 = vector.load %arg7[%c0_37, %c0_38, %c0_39, %c0_40] : memref<1x8x16x8xf32, #tpu.memory_space<vmem>>, vector<1x8x16x8xf32>
    %36 = vector.shape_cast %35 : vector<1x8x16x8xf32> to vector<8x16x8xf32>
    %37 = vector.extract_strided_slice %19 {offsets = [0, 0, 0], sizes = [1, 8, 16], strides = [1, 1, 1]} : vector<4x8x16xf32> to vector<1x8x16xf32>
    %38 = vector.shape_cast %37 : vector<1x8x16xf32> to vector<8x16xf32>
    %39 = vector.shape_cast %38 : vector<8x16xf32> to vector<8x16x1xf32>
    %40 = vector.broadcast %39 : vector<8x16x1xf32> to vector<8x16x8xf32>
    %41 = arith.mulf %40, %36 : vector<8x16x8xf32>
    %cst_41 = arith.constant dense<0.000000e+00> : vector<8x8xf32>
    %42 = vector.multi_reduction <add>, %41, %cst_41 [1] : vector<8x16x8xf32> to vector<8x8xf32>
    %43 = vector.extract_strided_slice %16 {offsets = [0, 0, 0], sizes = [1, 8, 1], strides = [1, 1, 1]} : vector<4x8x1xf32> to vector<1x8x1xf32>
    %44 = vector.shape_cast %43 : vector<1x8x1xf32> to vector<8x1xf32>
    %c0_42 = arith.constant 0 : index
    %c0_43 = arith.constant 0 : index
    %c128 = arith.constant 128 : index
    %45 = vector.load %arg11[%c0_42, %c0_43, %c128] : memref<4x8x256xf32, #tpu.memory_space<vmem>>, vector<1x8x8xf32>
    %46 = vector.shape_cast %45 : vector<1x8x8xf32> to vector<8x8xf32>
    %47 = vector.broadcast %44 : vector<8x1xf32> to vector<8x8xf32>
    %48 = arith.mulf %47, %46 : vector<8x8xf32>
    %49 = arith.addf %48, %42 : vector<8x8xf32>
    %c0_44 = arith.constant 0 : index
    %c0_45 = arith.constant 0 : index
    %c128_46 = arith.constant 128 : index
    %50 = vector.load %arg11[%c0_44, %c0_45, %c128_46] : memref<4x8x256xf32, #tpu.memory_space<vmem>>, vector<1x8x8xf32>
    %51 = vector.shape_cast %50 : vector<1x8x8xf32> to vector<8x8xf32>
    %52 = vector.shape_cast %49 : vector<8x8xf32> to vector<1x8x8xf32>
    tpu.vector_store %arg11[%c0_44, %c0_45, %c128_46], %52 {strides = array<i32>} : memref<4x8x256xf32, #tpu.memory_space<vmem>>, vector<1x8x8xf32>,
    %53 = vector.extract_strided_slice %19 {offsets = [1, 0, 0], sizes = [1, 8, 16], strides = [1, 1, 1]} : vector<4x8x16xf32> to vector<1x8x16xf32>
    %54 = vector.shape_cast %53 : vector<1x8x16xf32> to vector<8x16xf32>
    %55 = vector.shape_cast %54 : vector<8x16xf32> to vector<8x16x1xf32>
    %56 = vector.broadcast %55 : vector<8x16x1xf32> to vector<8x16x8xf32>
    %57 = arith.mulf %56, %36 : vector<8x16x8xf32>
    %cst_47 = arith.constant dense<0.000000e+00> : vector<8x8xf32>
    %58 = vector.multi_reduction <add>, %57, %cst_47 [1] : vector<8x16x8xf32> to vector<8x8xf32>
    %59 = vector.extract_strided_slice %16 {offsets = [1, 0, 0], sizes = [1, 8, 1], strides = [1, 1, 1]} : vector<4x8x1xf32> to vector<1x8x1xf32>
    %60 = vector.shape_cast %59 : vector<1x8x1xf32> to vector<8x1xf32>
    %c1 = arith.constant 1 : index
    %c0_48 = arith.constant 0 : index
    %c128_49 = arith.constant 128 : index
    %61 = vector.load %arg11[%c1, %c0_48, %c128_49] : memref<4x8x256xf32, #tpu.memory_space<vmem>>, vector<1x8x8xf32>
    %62 = vector.shape_cast %61 : vector<1x8x8xf32> to vector<8x8xf32>
    %63 = vector.broadcast %60 : vector<8x1xf32> to vector<8x8xf32>
    %64 = arith.mulf %63, %62 : vector<8x8xf32>
    %65 = arith.addf %64, %58 : vector<8x8xf32>
    %c1_50 = arith.constant 1 : index
    %c0_51 = arith.constant 0 : index
    %c128_52 = arith.constant 128 : index
    %66 = vector.load %arg11[%c1_50, %c0_51, %c128_52] : memref<4x8x256xf32, #tpu.memory_space<vmem>>, vector<1x8x8xf32>
    %67 = vector.shape_cast %66 : vector<1x8x8xf32> to vector<8x8xf32>
    %68 = vector.shape_cast %65 : vector<8x8xf32> to vector<1x8x8xf32>
    tpu.vector_store %arg11[%c1_50, %c0_51, %c128_52], %68 {strides = array<i32>} : memref<4x8x256xf32, #tpu.memory_space<vmem>>, vector<1x8x8xf32>,
    %69 = vector.extract_strided_slice %19 {offsets = [2, 0, 0], sizes = [1, 8, 16], strides = [1, 1, 1]} : vector<4x8x16xf32> to vector<1x8x16xf32>
    %70 = vector.shape_cast %69 : vector<1x8x16xf32> to vector<8x16xf32>
    %71 = vector.shape_cast %70 : vector<8x16xf32> to vector<8x16x1xf32>
    %72 = vector.broadcast %71 : vector<8x16x1xf32> to vector<8x16x8xf32>
    %73 = arith.mulf %72, %36 : vector<8x16x8xf32>
    %cst_53 = arith.constant dense<0.000000e+00> : vector<8x8xf32>
    %74 = vector.multi_reduction <add>, %73, %cst_53 [1] : vector<8x16x8xf32> to vector<8x8xf32>
    %75 = vector.extract_strided_slice %16 {offsets = [2, 0, 0], sizes = [1, 8, 1], strides = [1, 1, 1]} : vector<4x8x1xf32> to vector<1x8x1xf32>
    %76 = vector.shape_cast %75 : vector<1x8x1xf32> to vector<8x1xf32>
    %c2 = arith.constant 2 : index
    %c0_54 = arith.constant 0 : index
    %c128_55 = arith.constant 128 : index
    %77 = vector.load %arg11[%c2, %c0_54, %c128_55] : memref<4x8x256xf32, #tpu.memory_space<vmem>>, vector<1x8x8xf32>
    %78 = vector.shape_cast %77 : vector<1x8x8xf32> to vector<8x8xf32>
    %79 = vector.broadcast %76 : vector<8x1xf32> to vector<8x8xf32>
    %80 = arith.mulf %79, %78 : vector<8x8xf32>
    %81 = arith.addf %80, %74 : vector<8x8xf32>
    %c2_56 = arith.constant 2 : index
    %c0_57 = arith.constant 0 : index
    %c128_58 = arith.constant 128 : index
    %82 = vector.load %arg11[%c2_56, %c0_57, %c128_58] : memref<4x8x256xf32, #tpu.memory_space<vmem>>, vector<1x8x8xf32>
    %83 = vector.shape_cast %82 : vector<1x8x8xf32> to vector<8x8xf32>
    %84 = vector.shape_cast %81 : vector<8x8xf32> to vector<1x8x8xf32>
    tpu.vector_store %arg11[%c2_56, %c0_57, %c128_58], %84 {strides = array<i32>} : memref<4x8x256xf32, #tpu.memory_space<vmem>>, vector<1x8x8xf32>,
    %85 = vector.extract_strided_slice %19 {offsets = [3, 0, 0], sizes = [1, 8, 16], strides = [1, 1, 1]} : vector<4x8x16xf32> to vector<1x8x16xf32>
    %86 = vector.shape_cast %85 : vector<1x8x16xf32> to vector<8x16xf32>
    %87 = vector.shape_cast %86 : vector<8x16xf32> to vector<8x16x1xf32>
    %88 = vector.broadcast %87 : vector<8x16x1xf32> to vector<8x16x8xf32>
    %89 = arith.mulf %88, %36 : vector<8x16x8xf32>
    %cst_59 = arith.constant dense<0.000000e+00> : vector<8x8xf32>
    %90 = vector.multi_reduction <add>, %89, %cst_59 [1] : vector<8x16x8xf32> to vector<8x8xf32>
    %91 = vector.extract_strided_slice %16 {offsets = [3, 0, 0], sizes = [1, 8, 1], strides = [1, 1, 1]} : vector<4x8x1xf32> to vector<1x8x1xf32>
    %92 = vector.shape_cast %91 : vector<1x8x1xf32> to vector<8x1xf32>
    %c3 = arith.constant 3 : index
    %c0_60 = arith.constant 0 : index
    %c128_61 = arith.constant 128 : index
    %93 = vector.load %arg11[%c3, %c0_60, %c128_61] : memref<4x8x256xf32, #tpu.memory_space<vmem>>, vector<1x8x8xf32>
    %94 = vector.shape_cast %93 : vector<1x8x8xf32> to vector<8x8xf32>
    %95 = vector.broadcast %92 : vector<8x1xf32> to vector<8x8xf32>
    %96 = arith.mulf %95, %94 : vector<8x8xf32>
    %97 = arith.addf %96, %90 : vector<8x8xf32>
    %c3_62 = arith.constant 3 : index
    %c0_63 = arith.constant 0 : index
    %c128_64 = arith.constant 128 : index
    %98 = vector.load %arg11[%c3_62, %c0_63, %c128_64] : memref<4x8x256xf32, #tpu.memory_space<vmem>>, vector<1x8x8xf32>
    %99 = vector.shape_cast %98 : vector<1x8x8xf32> to vector<8x8xf32>
    %100 = vector.shape_cast %97 : vector<8x8xf32> to vector<1x8x8xf32>
    tpu.vector_store %arg11[%c3_62, %c0_63, %c128_64], %100 {strides = array<i32>} : memref<4x8x256xf32, #tpu.memory_space<vmem>>, vector<1x8x8xf32>,
    %c0_i32_65 = arith.constant 0 : i32
    %101 = arith.cmpi eq, %arg2, %c0_i32_65 : i32
    %102 = arith.extui %101 : i1 to i32
    %c0_i32_66 = arith.constant 0 : i32
    %103 = arith.cmpi ne, %102, %c0_i32_66 : i32
    scf.if %103 {
      %c0_67 = arith.constant 0 : index
      %c0_68 = arith.constant 0 : index
      %c0_69 = arith.constant 0 : index
      %104 = vector.load %arg10[%c0_67, %c0_68, %c0_69] : memref<4x8x1xf32, #tpu.memory_space<vmem>>, vector<4x8x1xf32>
      %105 = tpu.reciprocal %104 {approx = true} : vector<4x8x1xf32> -> vector<4x8x1xf32>
      %106 = arith.mulf %104, %105 : vector<4x8x1xf32>
      %cst_70 = arith.constant 2.000000e+00 : f32
      %107 = vector.broadcast %cst_70 : f32 to vector<4x8x1xf32>
      %108 = arith.subf %107, %106 : vector<4x8x1xf32>
      %109 = arith.mulf %105, %108 : vector<4x8x1xf32>
      %c0_71 = arith.constant 0 : index
      %c0_72 = arith.constant 0 : index
      %c0_73 = arith.constant 0 : index
      %110 = vector.load %arg11[%c0_71, %c0_72, %c0_73] : memref<4x8x256xf32, #tpu.memory_space<vmem>>, vector<4x8x256xf32>
      %111 = vector.broadcast %109 : vector<4x8x1xf32> to vector<4x8x256xf32>
      %112 = arith.mulf %110, %111 : vector<4x8x256xf32>
      %c0_74 = arith.constant 0 : index
      %c0_75 = arith.constant 0 : index
      %c0_76 = arith.constant 0 : index
      %c0_77 = arith.constant 0 : index
      %113 = vector.load %arg8[%c0_74, %c0_75, %c0_76, %c0_77] : memref<1x4x8x256xf32, #tpu.memory_space<vmem>>, vector<1x4x8x256xf32>
      %114 = vector.shape_cast %113 : vector<1x4x8x256xf32> to vector<4x8x256xf32>
      %115 = vector.shape_cast %112 : vector<4x8x256xf32> to vector<1x4x8x256xf32>
      tpu.vector_store %arg8[%c0_74, %c0_75, %c0_76, %c0_77], %115 {strides = array<i32>} : memref<1x4x8x256xf32, #tpu.memory_space<vmem>>, vector<1x4x8x256xf32>,
    } else {
    }
    return
  }
  func.func @transform_0(%arg0: i32, %arg1: i32, %arg2: i32) -> (i32, i32, i32, i32) {
    %c0_i32 = arith.constant 0 : i32
    %c0_i32_0 = arith.constant 0 : i32
    %c0_i32_1 = arith.constant 0 : i32
    return %arg0, %c0_i32, %arg1, %c0_i32_0 : i32, i32, i32, i32
  }
  func.func @transform_1(%arg0: i32, %arg1: i32, %arg2: i32) -> (i32, i32, i32, i32) {
    %c0_i32 = arith.constant 0 : i32
    %c0_i32_0 = arith.constant 0 : i32
    %c0_i32_1 = arith.constant 0 : i32
    return %arg0, %c0_i32, %arg2, %c0_i32_0 : i32, i32, i32, i32
  }
  func.func @transform_2(%arg0: i32, %arg1: i32, %arg2: i32) -> (i32, i32, i32, i32) {
    %c0_i32 = arith.constant 0 : i32
    %c0_i32_0 = arith.constant 0 : i32
    %c0_i32_1 = arith.constant 0 : i32
    return %arg0, %c0_i32, %arg2, %c0_i32_0 : i32, i32, i32, i32
  }
  func.func @transform_3(%arg0: i32, %arg1: i32, %arg2: i32) -> (i32, i32, i32, i32) {
    %c0_i32 = arith.constant 0 : i32
    %c0_i32_0 = arith.constant 0 : i32
    return %arg0, %c0_i32, %arg1, %arg2 : i32, i32, i32, i32
  }
  func.func @transform_4(%arg0: i32, %arg1: i32, %arg2: i32) -> (i32, i32, i32, i32) {
    %c0_i32 = arith.constant 0 : i32
    %c0_i32_0 = arith.constant 0 : i32
    return %arg0, %arg1, %arg2, %c0_i32 : i32, i32, i32, i32
  }
  func.func @transform_5(%arg0: i32, %arg1: i32, %arg2: i32) -> (i32, i32, i32, i32) {
    %c0_i32 = arith.constant 0 : i32
    %c0_i32_0 = arith.constant 0 : i32
    %c0_i32_1 = arith.constant 0 : i32
    return %arg0, %c0_i32, %arg1, %c0_i32_0 : i32, i32, i32, i32
  }
}

</mosaic_0001>

<llo_original>
// kernel: tpu_custom_call.1
$region0: #{tpu_custom_call.1}
  #allocation0 [shape = 'u32[]', space=smem, size = 0x4, offset = 0x4, fixed_abs, tag = 'smem constant byte address 0x4 - core index']
  #allocation1 [shape = 'u32[144,128]{1,0:T(1,128)}', space=vmem, size = 0x12000, scoped, tag = 'internal scratch']
  #allocation2 [shape = 'f32[4,8,1]{2,1,0:T(8,128)}', space=vmem, size = 0x4000, scoped, tag = 'scratch operand']
  #allocation3 [shape = 'f32[4,8,1]{2,1,0:T(8,128)}', space=vmem, size = 0x4000, scoped, tag = 'scratch operand']
  #allocation4 [shape = 'f32[4,8,256]{2,1,0:T(8,128)}', space=vmem, size = 0x8000, scoped, tag = 'scratch operand']
  %s0 = inlined_call_operand.vmem [shape: f32[2,4,16,22], index: 0, kind: input, shape index: {}]
  %s1 = inlined_call_operand.vmem [shape: f32[2,4,16,22], index: 1, kind: input, shape index: {}]
  %s2 = inlined_call_operand.vmem [shape: f32[2,4,16,128], index: 2, kind: input, shape index: {}]
  %s3 = inlined_call_operand.vmem [shape: f32[2,4,16,16], index: 3, kind: input, shape index: {}]
  %s4 = inlined_call_operand.vmem [shape: f32[2,16,16,8], index: 4, kind: input, shape index: {}]
  %s5 = inlined_call_operand.hbm [shape: f32[2,4,16,256], index: 5, kind: output, shape index: {}]
  %s6 = sld [smem:[#allocation0]]
  $region137: #{tpu_custom_call.1} parent=0
    _
  %s8 = ssub.s32 1, %s6
  %s9 = scalar_select 0, %s8, %s6
  $region1: #{tpu_custom_call.1} parent=0
    #allocation5 [shape = 'u8[32768]{0}', space=vmem, size = 0x8000, scoped, tag = 'input window, operand 0']
    #allocation6 [shape = 'u8[32768]{0}', space=vmem, size = 0x8000, scoped, tag = 'input window, operand 3']
    #allocation7 [shape = 'u8[65536]{0}', space=vmem, size = 0x10000, scoped, tag = 'output window, operand 0']
    #allocation8 [shape = 's32[2]{0}', space=sflag, size = 0x8, scoped, tag = 'scoped memory for tpu_custom_call.1']
    %10 = vsyncpa [#allocation8], 0
    %s11 = scalar_lea.sflag [#allocation8], 1
    %12 = vsyncpa %s11, 0
    loop: start=0, step=1, limit=6
    $region2: #{tpu_custom_call.1} parent=1 // loop_pre_header
      _
    $region3: #{tpu_custom_call.1} parent=1 // loop_header
      %s14 = sphi 0, %s18
      %p15 = scmp.ge.s32.totalorder %s14, 6
      %s21 = sphi 0, %s40
      %s22 = sphi 0, %s36
      %s23 = sphi 0, %s32
      %s24 = sphi 0, %s21
      %s25 = sphi 0, %s22
      %s26 = sphi 0, %s23
      %s27 = sphi 0, %s24
      %s28 = sphi 0, %s25
      %s29 = sphi 0, %s26
      %s45 = sphi 0, %s47
      %s48 = sphi 0, %s45
      %s49 = sphi 0, %s48
      %s65 = sphi 0, %s49
      %s73 = sphi 0, %s75
      %s76 = sphi 0, %s73
      %s77 = sphi 0, %s76
      %s93 = sphi 0, %s77
      %s101 = sphi 0, %s103
      %s104 = sphi 0, %s101
      %s105 = sphi 0, %s104
      %s121 = sphi 0, %s105
      %s131 = sphi 0, %s133
      %s134 = sphi 0, %s131
      %s135 = sphi 0, %s134
      %s151 = sphi 0, %s135
      %s161 = sphi 0, %s163
      %s164 = sphi 0, %s161
      %s165 = sphi 0, %s164
      %s181 = sphi 0, %s165
      %s189 = sphi 0, %s191
      %s192 = sphi 0, %s189
      %s193 = sphi 0, %s192
      %s209 = sphi 0, %s193
    $region4: #{tpu_custom_call.1} parent=1 // loop_header_branch
      %17 = sbr.rel (%p15) target = $region8
    $region5: #{tpu_custom_call.1} parent=1 // loop_body
      %s19 = ssub.s32 %s14, 1
      %s20 = ssub.s32 %s14, 2
      %s30 = sadd.s32 1, %s23
      %p31 = scmp.ge.s32.totalorder %s30, 1
      %s32 = scalar_select %p31, 0, %s30
      %s33 = sadd.s32 1, %s22
      %s34 = scalar_select %p31, %s33, %s22
      %p35 = scmp.ge.s32.totalorder %s34, 2
      %s36 = scalar_select %p35, 0, %s34
      %s37 = sadd.s32 1, %s21
      %s38 = scalar_select %p35, %s37, %s21
      %p39 = scmp.ge.s32.totalorder %s38, 2
      %s40 = scalar_select %p39, 0, %s38
      %s41 = ssub.s32 %s21, %s40
      %s42 = ssub.s32 %s22, %s36
      %s43 = sor.u32 %s41, %s42
      %p44 = scmp.eq.s32.totalorder %s43, 0
      %s46 = sadd.s32 %s45, 1
      %s47 = scalar_select %p44, %s45, %s46
      %p50 = pneg %p44
      %p51 = scmp.eq.s32.totalorder %s14, 3
      %p52 = por %p50, %p51
      %p53 = scmp.ne.s32.totalorder %s45, %s48
      %p54 = scmp.eq.s32.totalorder %s14, 0
      %p55 = por %p53, %p54
      %p56 = scmp.ne.s32.totalorder %s45, %s48
      %p57 = scmp.eq.s32.totalorder %s19, 3
      %p58 = por %p56, %p57
      %p59 = scmp.ne.s32.totalorder %s48, %s49
      %p60 = scmp.eq.s32.totalorder %s19, 0
      %p61 = por %p59, %p60
      %p62 = scmp.ne.s32.totalorder %s48, %s49
      %p63 = scmp.eq.s32.totalorder %s20, 3
      %p64 = por %p62, %p63
      %p66 = scmp.ne.s32.totalorder %s49, %s65
      %p67 = scmp.eq.s32.totalorder %s20, 0
      %p68 = por %p66, %p67
      %s69 = ssub.s32 %s21, %s40
      %s70 = ssub.s32 %s23, %s32
      %s71 = sor.u32 %s69, %s70
      %p72 = scmp.eq.s32.totalorder %s71, 0
      %s74 = sadd.s32 %s73, 1
      %s75 = scalar_select %p72, %s73, %s74
      %p78 = pneg %p72
      %p79 = scmp.eq.s32.totalorder %s14, 3
      %p80 = por %p78, %p79
      %p81 = scmp.ne.s32.totalorder %s73, %s76
      %p82 = scmp.eq.s32.totalorder %s14, 0
      %p83 = por %p81, %p82
      %p84 = scmp.ne.s32.totalorder %s73, %s76
      %p85 = scmp.eq.s32.totalorder %s19, 3
      %p86 = por %p84, %p85
      %p87 = scmp.ne.s32.totalorder %s76, %s77
      %p88 = scmp.eq.s32.totalorder %s19, 0
      %p89 = por %p87, %p88
      %p90 = scmp.ne.s32.totalorder %s76, %s77
      %p91 = scmp.eq.s32.totalorder %s20, 3
      %p92 = por %p90, %p91
      %p94 = scmp.ne.s32.totalorder %s77, %s93
      %p95 = scmp.eq.s32.totalorder %s20, 0
      %p96 = por %p94, %p95
      %s97 = ssub.s32 %s21, %s40
      %s98 = ssub.s32 %s23, %s32
      %s99 = sor.u32 %s97, %s98
      %p100 = scmp.eq.s32.totalorder %s99, 0
      %s102 = sadd.s32 %s101, 1
      %s103 = scalar_select %p100, %s101, %s102
      %p106 = pneg %p100
      %p107 = scmp.eq.s32.totalorder %s14, 3
      %p108 = por %p106, %p107
      %p109 = scmp.ne.s32.totalorder %s101, %s104
      %p110 = scmp.eq.s32.totalorder %s14, 0
      %p111 = por %p109, %p110
      %p112 = scmp.ne.s32.totalorder %s101, %s104
      %p113 = scmp.eq.s32.totalorder %s19, 3
      %p114 = por %p112, %p113
      %p115 = scmp.ne.s32.totalorder %s104, %s105
      %p116 = scmp.eq.s32.totalorder %s19, 0
      %p117 = por %p115, %p116
      %p118 = scmp.ne.s32.totalorder %s104, %s105
      %p119 = scmp.eq.s32.totalorder %s20, 3
      %p120 = por %p118, %p119
      %p122 = scmp.ne.s32.totalorder %s105, %s121
      %p123 = scmp.eq.s32.totalorder %s20, 0
      %p124 = por %p122, %p123
      %s125 = ssub.s32 %s21, %s40
      %s126 = ssub.s32 %s22, %s36
      %s127 = sor.u32 %s125, %s126
      %s128 = ssub.s32 %s23, %s32
      %s129 = sor.u32 %s127, %s128
      %p130 = scmp.eq.s32.totalorder %s129, 0
      %s132 = sadd.s32 %s131, 1
      %s133 = scalar_select %p130, %s131, %s132
      %p136 = pneg %p130
      %p137 = scmp.eq.s32.totalorder %s14, 3
      %p138 = por %p136, %p137
      %p139 = scmp.ne.s32.totalorder %s131, %s134
      %p140 = scmp.eq.s32.totalorder %s14, 0
      %p141 = por %p139, %p140
      %p142 = scmp.ne.s32.totalorder %s131, %s134
      %p143 = scmp.eq.s32.totalorder %s19, 3
      %p144 = por %p142, %p143
      %p145 = scmp.ne.s32.totalorder %s134, %s135
      %p146 = scmp.eq.s32.totalorder %s19, 0
      %p147 = por %p145, %p146
      %p148 = scmp.ne.s32.totalorder %s134, %s135
      %p149 = scmp.eq.s32.totalorder %s20, 3
      %p150 = por %p148, %p149
      %p152 = scmp.ne.s32.totalorder %s135, %s151
      %p153 = scmp.eq.s32.totalorder %s20, 0
      %p154 = por %p152, %p153
      %s155 = ssub.s32 %s21, %s40
      %s156 = ssub.s32 %s22, %s36
      %s157 = sor.u32 %s155, %s156
      %s158 = ssub.s32 %s23, %s32
      %s159 = sor.u32 %s157, %s158
      %p160 = scmp.eq.s32.totalorder %s159, 0
      %s162 = sadd.s32 %s161, 1
      %s163 = scalar_select %p160, %s161, %s162
      %p166 = pneg %p160
      %p167 = scmp.eq.s32.totalorder %s14, 3
      %p168 = por %p166, %p167
      %p169 = scmp.ne.s32.totalorder %s161, %s164
      %p170 = scmp.eq.s32.totalorder %s14, 0
      %p171 = por %p169, %p170
      %p172 = scmp.ne.s32.totalorder %s161, %s164
      %p173 = scmp.eq.s32.totalorder %s19, 3
      %p174 = por %p172, %p173
      %p175 = scmp.ne.s32.totalorder %s164, %s165
      %p176 = scmp.eq.s32.totalorder %s19, 0
      %p177 = por %p175, %p176
      %p178 = scmp.ne.s32.totalorder %s164, %s165
      %p179 = scmp.eq.s32.totalorder %s20, 3
      %p180 = por %p178, %p179
      %p182 = scmp.ne.s32.totalorder %s165, %s181
      %p183 = scmp.eq.s32.totalorder %s20, 0
      %p184 = por %p182, %p183
      %s185 = ssub.s32 %s21, %s40
      %s186 = ssub.s32 %s22, %s36
      %s187 = sor.u32 %s185, %s186
      %p188 = scmp.eq.s32.totalorder %s187, 0
      %s190 = sadd.s32 %s189, 1
      %s191 = scalar_select %p188, %s189, %s190
      %p194 = pneg %p188
      %p195 = scmp.eq.s32.totalorder %s14, 3
      %p196 = por %p194, %p195
      %p197 = scmp.ne.s32.totalorder %s189, %s192
      %p198 = scmp.eq.s32.totalorder %s14, 0
      %p199 = por %p197, %p198
      %p200 = scmp.ne.s32.totalorder %s189, %s192
      %p201 = scmp.eq.s32.totalorder %s19, 3
      %p202 = por %p200, %p201
      %p203 = scmp.ne.s32.totalorder %s192, %s193
      %p204 = scmp.eq.s32.totalorder %s19, 0
      %p205 = por %p203, %p204
      %p206 = scmp.ne.s32.totalorder %s192, %s193
      %p207 = scmp.eq.s32.totalorder %s20, 3
      %p208 = por %p206, %p207
      %p210 = scmp.ne.s32.totalorder %s193, %s209
      %p211 = scmp.eq.s32.totalorder %s20, 0
      %p212 = por %p210, %p211
      %p213 = scmp.le.s32.totalorder 1, %s14
      %p214 = scmp.lt.s32.totalorder %s14, 5
      %p215 = pnand %p213, %p214
      %p216 = pneg %p215
      // Predicated region
      $region9: #{tpu_custom_call.1} parent=5 // pred_check
        _
      $region10: #{tpu_custom_call.1} parent=5 // pred_check_branch
        %218 = sbr.rel (%p215) target = $region12
      $region11: #{tpu_custom_call.1} parent=5 // pred_region
        %s219 = ssub.s32 %s14, 1
      $region12: #{tpu_custom_call.1} parent=5 // pred_fallthru
        _
      %p220 = scmp.lt.s32.totalorder %s14, 4
      // Predicated region
      $region13: #{tpu_custom_call.1} parent=5 // pred_check
        %p221 = pneg %p220
      $region14: #{tpu_custom_call.1} parent=5 // pred_check_branch
        %223 = sbr.rel (%p221) target = $region16
      $region15: #{tpu_custom_call.1} parent=5 // pred_region
        // Predicated region
        $region17: #{tpu_custom_call.1} parent=15 // pred_check
          %p224 = pneg %p55
        $region18: #{tpu_custom_call.1} parent=15 // pred_check_branch
          %226 = sbr.rel (%p224) target = $region20
        $region19: #{tpu_custom_call.1} parent=15 // pred_region
          %s227 = sand.u32 %s45, 1
          %s228 = sand.u32 %s45, 1
          %s229 = smul.addr %s228, 32
          %s230 = scalar_lea.vmem [#allocation5], %s229
          %s231 = smul.addr %s21, 8
          %s232 = sadd.s32 %s22, %s231
          %s233 = smul.addr %s232, 8
          %s234 = scalar_lea.vmem %s0, %s233
          // Predicated region
          $region21: #{tpu_custom_call.1} parent=19 // pred_check
            _
          $region22: #{tpu_custom_call.1} parent=19 // pred_check_branch
            %236 = sbr.rel (0) target = $region24
          $region23: #{tpu_custom_call.1} parent=19 // pred_region
            // Predicated region
            $region25: #{tpu_custom_call.1} parent=23 // pred_check
              _
            $region26: #{tpu_custom_call.1} parent=23 // pred_check_branch
              %238 = sbr.rel (0) target = $region28
            $region27: #{tpu_custom_call.1} parent=23 // pred_region
              // Predicated region
              $region40: #{tpu_custom_call.1} parent=27 // pred_check
                _
              $region41: #{tpu_custom_call.1} parent=27 // pred_check_branch
                %259 = sbr.rel (0) target = $region43
              $region42: #{tpu_custom_call.1} parent=27 // pred_region
                loop: start=0, step=1, limit=1
                $region44: #{tpu_custom_call.1} parent=42 // loop_pre_header
                  _
                $region45: #{tpu_custom_call.1} parent=42 // loop_header
                  %s261 = sphi 0, %s265
                  %p262 = scmp.ge.s32.totalorder %s261, 1
                  %s266 = sphi %s234, %s234
                  %s267 = sphi %s230, %s230
                $region46: #{tpu_custom_call.1} parent=42 // loop_header_branch
                  %264 = sbr.rel (%p262) target = $region50
                $region47: #{tpu_custom_call.1} parent=42 // loop_body
                  %v268 = vld [vmem:[%s266] sm:$0xff]
                  %269 = vst [vmem:[%s267] sm:$0xff] %v268
                  %v270 = vld [vmem:[%s266 + $0x10] sm:$0xff]
                  %271 = vst [vmem:[%s267 + $0x8] sm:$0xff] %v270
                  %v272 = vld [vmem:[%s266 + $0x20] sm:$0xff]
                  %273 = vst [vmem:[%s267 + $0x10] sm:$0xff] %v272
                  %v274 = vld [vmem:[%s266 + $0x30] sm:$0xff]
                  %275 = vst [vmem:[%s267 + $0x18] sm:$0xff] %v274
                $region48: #{tpu_custom_call.1} parent=42 // loop_footer
                  %s265 = sadd.s32 1, %s261
                $region49: #{tpu_custom_call.1} parent=42 // loop_footer_branch
                  %260 = sbr.rel target = $region45
                $region50: #{tpu_custom_call.1} parent=42 // loop_exit
                  _
              $region43: #{tpu_custom_call.1} parent=27 // pred_fallthru
                _
              // Predicated region
              $region51: #{tpu_custom_call.1} parent=27 // pred_check
                _
              $region52: #{tpu_custom_call.1} parent=27 // pred_check_branch
                %277 = sbr.rel target = $region54
              $region53: #{tpu_custom_call.1} parent=27 // pred_region
                _
              $region54: #{tpu_custom_call.1} parent=27 // pred_fallthru
                _
            $region28: #{tpu_custom_call.1} parent=23 // pred_fallthru
              _
            // Predicated region
            $region29: #{tpu_custom_call.1} parent=23 // pred_check
              _
            $region30: #{tpu_custom_call.1} parent=23 // pred_check_branch
              %240 = sbr.rel target = $region32
            $region31: #{tpu_custom_call.1} parent=23 // pred_region
              loop: start=0, step=1, limit=1
              $region33: #{tpu_custom_call.1} parent=31 // loop_pre_header
                _
              $region34: #{tpu_custom_call.1} parent=31 // loop_header
                %s243 = sphi 0, %s247
                %p244 = scmp.ge.s32.totalorder %s243, 1
                %s248 = sphi %s234, %s234
                %s249 = sphi %s230, %s230
              $region35: #{tpu_custom_call.1} parent=31 // loop_header_branch
                %246 = sbr.rel (%p244) target = $region39
              $region36: #{tpu_custom_call.1} parent=31 // loop_body
                %v250 = vld [vmem:[%s248] sm:$0xff]
                %251 = vst [vmem:[%s249] sm:$0xff] %v250
                %v252 = vld [vmem:[%s248 + $0x10] sm:$0xff]
                %253 = vst [vmem:[%s249 + $0x8] sm:$0xff] %v252
                %v254 = vld [vmem:[%s248 + $0x20] sm:$0xff]
                %255 = vst [vmem:[%s249 + $0x10] sm:$0xff] %v254
                %v256 = vld [vmem:[%s248 + $0x30] sm:$0xff]
                %257 = vst [vmem:[%s249 + $0x18] sm:$0xff] %v256
              $region37: #{tpu_custom_call.1} parent=31 // loop_footer
                %s247 = sadd.s32 1, %s243
              $region38: #{tpu_custom_call.1} parent=31 // loop_footer_branch
                %242 = sbr.rel target = $region34
              $region39: #{tpu_custom_call.1} parent=31 // loop_exit
                _
            $region32: #{tpu_custom_call.1} parent=23 // pred_fallthru
              _
          $region24: #{tpu_custom_call.1} parent=19 // pred_fallthru
            _
          %278 = vnop
        $region20: #{tpu_custom_call.1} parent=15 // pred_fallthru
          _
        // Predicated region
        $region55: #{tpu_custom_call.1} parent=15 // pred_check
          %p279 = pneg %p83
        $region56: #{tpu_custom_call.1} parent=15 // pred_check_branch
          %281 = sbr.rel (%p279) target = $region58
        $region57: #{tpu_custom_call.1} parent=15 // pred_region
          %s282 = smul.u32 2, %s23
          %p283 = scmp.lt.s32.totalorder %s21, 1
          %s284 = scalar_select %p283, %s21, 1
          %p285 = scmp.lt.s32.totalorder %s282, 1
          %s286 = scalar_select %p285, %s282, 1
          %s287 = smul.addr %s284, 8
          %s288 = sadd.s32 %s286, %s287
          %s289 = smul.addr %s288, 8
          %s290 = scalar_lea.vmem %s1, %s289
          %s291 = smul.u32 2, %s23
        $region58: #{tpu_custom_call.1} parent=15 // pred_fallthru
          _
        // Predicated region
        $region59: #{tpu_custom_call.1} parent=15 // pred_check
          %p292 = pneg %p111
        $region60: #{tpu_custom_call.1} parent=15 // pred_check_branch
          %294 = sbr.rel (%p292) target = $region62
        $region61: #{tpu_custom_call.1} parent=15 // pred_region
          %s295 = smul.u32 2, %s23
          %p296 = scmp.lt.s32.totalorder %s21, 1
          %s297 = scalar_select %p296, %s21, 1
          %p298 = scmp.lt.s32.totalorder %s295, 1
          %s299 = scalar_select %p298, %s295, 1
          %s300 = smul.addr %s297, 8
          %s301 = sadd.s32 %s299, %s300
          %s302 = smul.addr %s301, 8
          %s303 = scalar_lea.vmem %s2, %s302
          %s304 = smul.u32 2, %s23
        $region62: #{tpu_custom_call.1} parent=15 // pred_fallthru
          _
        // Predicated region
        $region63: #{tpu_custom_call.1} parent=15 // pred_check
          %p305 = pneg %p141
        $region64: #{tpu_custom_call.1} parent=15 // pred_check_branch
          %307 = sbr.rel (%p305) target = $region66
        $region65: #{tpu_custom_call.1} parent=15 // pred_region
          %s308 = sand.u32 %s131, 1
          %s309 = sand.u32 %s131, 1
          %s310 = smul.addr %s309, 32
          %s311 = scalar_lea.vmem [#allocation6], %s310
          %s312 = sadd.s32 %s23, %s22
          %s313 = smul.addr %s21, 8
          %s314 = sadd.s32 %s312, %s313
          %s315 = smul.addr %s314, 8
          %s316 = scalar_lea.vmem %s3, %s315
          // Predicated region
          $region67: #{tpu_custom_call.1} parent=65 // pred_check
            _
          $region68: #{tpu_custom_call.1} parent=65 // pred_check_branch
            %318 = sbr.rel (0) target = $region70
          $region69: #{tpu_custom_call.1} parent=65 // pred_region
            // Predicated region
            $region71: #{tpu_custom_call.1} parent=69 // pred_check
              _
            $region72: #{tpu_custom_call.1} parent=69 // pred_check_branch
              %320 = sbr.rel (0) target = $region74
            $region73: #{tpu_custom_call.1} parent=69 // pred_region
              // Predicated region
              $region86: #{tpu_custom_call.1} parent=73 // pred_check
                _
              $region87: #{tpu_custom_call.1} parent=73 // pred_check_branch
                %341 = sbr.rel (0) target = $region89
              $region88: #{tpu_custom_call.1} parent=73 // pred_region
                loop: start=0, step=1, limit=1
                $region90: #{tpu_custom_call.1} parent=88 // loop_pre_header
                  _
                $region91: #{tpu_custom_call.1} parent=88 // loop_header
                  %s343 = sphi 0, %s347
                  %p344 = scmp.ge.s32.totalorder %s343, 1
                  %s348 = sphi %s316, %s316
                  %s349 = sphi %s311, %s311
                $region92: #{tpu_custom_call.1} parent=88 // loop_header_branch
                  %346 = sbr.rel (%p344) target = $region96
                $region93: #{tpu_custom_call.1} parent=88 // loop_body
                  %v350 = vld [vmem:[%s348] sm:$0xff]
                  %351 = vst [vmem:[%s349] sm:$0xff] %v350
                  %v352 = vld [vmem:[%s348 + $0x10] sm:$0xff]
                  %353 = vst [vmem:[%s349 + $0x8] sm:$0xff] %v352
                  %v354 = vld [vmem:[%s348 + $0x20] sm:$0xff]
                  %355 = vst [vmem:[%s349 + $0x10] sm:$0xff] %v354
                  %v356 = vld [vmem:[%s348 + $0x30] sm:$0xff]
                  %357 = vst [vmem:[%s349 + $0x18] sm:$0xff] %v356
                $region94: #{tpu_custom_call.1} parent=88 // loop_footer
                  %s347 = sadd.s32 1, %s343
                $region95: #{tpu_custom_call.1} parent=88 // loop_footer_branch
                  %342 = sbr.rel target = $region91
                $region96: #{tpu_custom_call.1} parent=88 // loop_exit
                  _
              $region89: #{tpu_custom_call.1} parent=73 // pred_fallthru
                _
              // Predicated region
              $region97: #{tpu_custom_call.1} parent=73 // pred_check
                _
              $region98: #{tpu_custom_call.1} parent=73 // pred_check_branch
                %359 = sbr.rel target = $region100
              $region99: #{tpu_custom_call.1} parent=73 // pred_region
                _
              $region100: #{tpu_custom_call.1} parent=73 // pred_fallthru
                _
            $region74: #{tpu_custom_call.1} parent=69 // pred_fallthru
              _
            // Predicated region
            $region75: #{tpu_custom_call.1} parent=69 // pred_check
              _
            $region76: #{tpu_custom_call.1} parent=69 // pred_check_branch
              %322 = sbr.rel target = $region78
            $region77: #{tpu_custom_call.1} parent=69 // pred_region
              loop: start=0, step=1, limit=1
              $region79: #{tpu_custom_call.1} parent=77 // loop_pre_header
                _
              $region80: #{tpu_custom_call.1} parent=77 // loop_header
                %s325 = sphi 0, %s329
                %p326 = scmp.ge.s32.totalorder %s325, 1
                %s330 = sphi %s316, %s316
                %s331 = sphi %s311, %s311
              $region81: #{tpu_custom_call.1} parent=77 // loop_header_branch
                %328 = sbr.rel (%p326) target = $region85
              $region82: #{tpu_custom_call.1} parent=77 // loop_body
                %v332 = vld [vmem:[%s330] sm:$0xff]
                %333 = vst [vmem:[%s331] sm:$0xff] %v332
                %v334 = vld [vmem:[%s330 + $0x10] sm:$0xff]
                %335 = vst [vmem:[%s331 + $0x8] sm:$0xff] %v334
                %v336 = vld [vmem:[%s330 + $0x20] sm:$0xff]
                %337 = vst [vmem:[%s331 + $0x10] sm:$0xff] %v336
                %v338 = vld [vmem:[%s330 + $0x30] sm:$0xff]
                %339 = vst [vmem:[%s331 + $0x18] sm:$0xff] %v338
              $region83: #{tpu_custom_call.1} parent=77 // loop_footer
                %s329 = sadd.s32 1, %s325
              $region84: #{tpu_custom_call.1} parent=77 // loop_footer_branch
                %324 = sbr.rel target = $region80
              $region85: #{tpu_custom_call.1} parent=77 // loop_exit
                _
            $region78: #{tpu_custom_call.1} parent=69 // pred_fallthru
              _
          $region70: #{tpu_custom_call.1} parent=65 // pred_fallthru
            _
          %360 = vnop
        $region66: #{tpu_custom_call.1} parent=15 // pred_fallthru
          _
        // Predicated region
        $region101: #{tpu_custom_call.1} parent=15 // pred_check
          %p361 = pneg %p171
        $region102: #{tpu_custom_call.1} parent=15 // pred_check_branch
          %363 = sbr.rel (%p361) target = $region104
        $region103: #{tpu_custom_call.1} parent=15 // pred_region
          %s364 = smul.u32 8, %s22
          %s365 = smul.u32 2, %s23
          %p366 = scmp.lt.s32.totalorder %s21, 1
          %s367 = scalar_select %p366, %s21, 1
          %p368 = scmp.lt.s32.totalorder %s364, 15
          %s369 = scalar_select %p368, %s364, 15
          %p370 = scmp.lt.s32.totalorder %s365, 1
          %s371 = scalar_select %p370, %s365, 1
          %s372 = smul.addr %s369, 2
          %s373 = sadd.s32 %s371, %s372
          %s374 = smul.addr %s367, 32
          %s375 = sadd.s32 %s373, %s374
          %s376 = smul.addr %s375, 8
          %s377 = scalar_lea.vmem %s4, %s376
          %s378 = smul.u32 8, %s22
          %s379 = smul.u32 2, %s23
        $region104: #{tpu_custom_call.1} parent=15 // pred_fallthru
          _
      $region16: #{tpu_custom_call.1} parent=5 // pred_fallthru
        _
      %p380 = scmp.le.s32.totalorder 1, %s14
      %p381 = scmp.lt.s32.totalorder %s14, 5
      %p382 = pnand %p380, %p381
      %p383 = pneg %p382
      // Predicated region
      $region105: #{tpu_custom_call.1} parent=5 // pred_check
        _
      $region106: #{tpu_custom_call.1} parent=5 // pred_check_branch
        %385 = sbr.rel (%p382) target = $region108
      $region107: #{tpu_custom_call.1} parent=5 // pred_region
        %s386 = ssub.s32 %s14, 1
        %s387 = sand.u32 %s48, 1
        %s388 = sand.u32 %s48, 1
        %s389 = smul.addr %s388, 32
        %s390 = scalar_lea.vmem [#allocation5], %s389
        // Predicated region
        $region109: #{tpu_custom_call.1} parent=107 // pred_check
          %p391 = pneg %p61
        $region110: #{tpu_custom_call.1} parent=107 // pred_check_branch
          %393 = sbr.rel (%p391) target = $region112
        $region111: #{tpu_custom_call.1} parent=107 // pred_region
          _
        $region112: #{tpu_custom_call.1} parent=107 // pred_fallthru
          _
        %s394 = sand.u32 %s134, 1
        %s395 = sand.u32 %s134, 1
        %s396 = smul.addr %s395, 32
        %s397 = scalar_lea.vmem [#allocation6], %s396
        // Predicated region
        $region113: #{tpu_custom_call.1} parent=107 // pred_check
          %p398 = pneg %p147
        $region114: #{tpu_custom_call.1} parent=107 // pred_check_branch
          %400 = sbr.rel (%p398) target = $region116
        $region115: #{tpu_custom_call.1} parent=107 // pred_region
          _
        $region116: #{tpu_custom_call.1} parent=107 // pred_fallthru
          _
        %s401 = sand.u32 %s48, 1
        %s402 = sand.u32 %s48, 1
        %s403 = smul.addr %s402, 32
        %s404 = scalar_lea.vmem [#allocation5], %s403
        %p405 = pneg %p61
        %p406 = pneg %p58
        %s407 = smul.u32 2, %s26
        %p408 = scmp.lt.s32.totalorder %s24, 1
        %s409 = scalar_select %p408, %s24, 1
        %p410 = scmp.lt.s32.totalorder %s407, 1
        %s411 = scalar_select %p410, %s407, 1
        %s412 = smul.addr %s409, 8
        %s413 = sadd.s32 %s411, %s412
        %s414 = smul.addr %s413, 8
        %s415 = scalar_lea.vmem %s1, %s414
        %p416 = pneg %p89
        %p417 = pneg %p86
        %s418 = smul.u32 2, %s26
        %p419 = scmp.lt.s32.totalorder %s24, 1
        %s420 = scalar_select %p419, %s24, 1
        %p421 = scmp.lt.s32.totalorder %s418, 1
        %s422 = scalar_select %p421, %s418, 1
        %s423 = smul.addr %s420, 8
        %s424 = sadd.s32 %s422, %s423
        %s425 = smul.addr %s424, 8
        %s426 = scalar_lea.vmem %s2, %s425
        %p427 = pneg %p117
        %p428 = pneg %p114
        %s429 = sand.u32 %s134, 1
        %s430 = sand.u32 %s134, 1
        %s431 = smul.addr %s430, 32
        %s432 = scalar_lea.vmem [#allocation6], %s431
        %p433 = pneg %p147
        %p434 = pneg %p144
        %s435 = smul.u32 8, %s25
        %s436 = smul.u32 2, %s26
        %p437 = scmp.lt.s32.totalorder %s24, 1
        %s438 = scalar_select %p437, %s24, 1
        %p439 = scmp.lt.s32.totalorder %s435, 15
        %s440 = scalar_select %p439, %s435, 15
        %p441 = scmp.lt.s32.totalorder %s436, 1
        %s442 = scalar_select %p441, %s436, 1
        %s443 = smul.addr %s440, 2
        %s444 = sadd.s32 %s442, %s443
        %s445 = smul.addr %s438, 32
        %s446 = sadd.s32 %s444, %s445
        %s447 = smul.addr %s446, 8
        %s448 = scalar_lea.vmem %s4, %s447
        %p449 = pneg %p177
        %p450 = pneg %p174
        %p451 = pneg %p205
        %p452 = pneg %p202
        %s453 = sand.u32 %s192, 1
        %s454 = scalar_lea.sflag [#allocation8], %s453
        %s455 = sand.u32 %s192, 1
        %s456 = smul.addr %s455, 64
        %s457 = scalar_lea.vmem [#allocation7], %s456
        %s458 = smul.u32 2, %s26
        %p459 = scmp.lt.s32.totalorder %s24, 1
        %s460 = scalar_select %p459, %s24, 1
        %p461 = scmp.lt.s32.totalorder %s458, 1
        %s462 = scalar_select %p461, %s458, 1
        %s463 = smul.addr %s460, 8
        %s464 = sadd.s32 %s462, %s463
        %s465 = smul.addr %s464, 8
        %s466 = scalar_lea.vmem %s1, %s465
        %s467 = smul.u32 2, %s26
        %s468 = smul.u32 2, %s26
        %p469 = scmp.lt.s32.totalorder %s24, 1
        %s470 = scalar_select %p469, %s24, 1
        %p471 = scmp.lt.s32.totalorder %s468, 1
        %s472 = scalar_select %p471, %s468, 1
        %s473 = smul.addr %s470, 8
        %s474 = sadd.s32 %s472, %s473
        %s475 = smul.addr %s474, 8
        %s476 = scalar_lea.vmem %s2, %s475
        %s477 = smul.u32 2, %s26
        %s478 = smul.u32 8, %s25
        %s479 = smul.u32 2, %s26
        %p480 = scmp.lt.s32.totalorder %s24, 1
        %s481 = scalar_select %p480, %s24, 1
        %p482 = scmp.lt.s32.totalorder %s478, 15
        %s483 = scalar_select %p482, %s478, 15
        %p484 = scmp.lt.s32.totalorder %s479, 1
        %s485 = scalar_select %p484, %s479, 1
        %s486 = smul.addr %s483, 2
        %s487 = sadd.s32 %s485, %s486
        %s488 = smul.addr %s481, 32
        %s489 = sadd.s32 %s487, %s488
        %s490 = smul.addr %s489, 8
        %s491 = scalar_lea.vmem %s4, %s490
        %s492 = smul.u32 8, %s25
        %s493 = smul.u32 2, %s26
        %p494 = scmp.eq.s32.totalorder %s26, 0
        // Predicated region
        $region117: #{tpu_custom_call.1} parent=107 // pred_check
          %p495 = pneg %p494
        $region118: #{tpu_custom_call.1} parent=107 // pred_check_branch
          %497 = sbr.rel (%p495) target = $region120
        $region119: #{tpu_custom_call.1} parent=107 // pred_region
          %vm498 = vcmask 7168
          %499 = vst.msk [vmem:[#allocation2] sm:$0xff] %vm498, -1e+30
          %500 = vst.msk [vmem:[#allocation2 + $0x8] sm:$0xff] %vm498, -1e+30
          %501 = vst.msk [vmem:[#allocation2 + $0x10] sm:$0xff] %vm498, -1e+30
          %502 = vst.msk [vmem:[#allocation2 + $0x18] sm:$0xff] %vm498, -1e+30
          %503 = vst.msk [vmem:[#allocation3] sm:$0xff] %vm498, 0.0
          %504 = vst.msk [vmem:[#allocation3 + $0x8] sm:$0xff] %vm498, 0.0
          %505 = vst.msk [vmem:[#allocation3 + $0x10] sm:$0xff] %vm498, 0.0
          %506 = vst.msk [vmem:[#allocation3 + $0x18] sm:$0xff] %vm498, 0.0
          %507 = vst [vmem:[#allocation4] sm:$0xff] 0.0
          %508 = vst [vmem:[#allocation4 + $0x8] sm:$0xff] 0.0
          %509 = vst [vmem:[#allocation4 + $0x10] sm:$0xff] 0.0
          %510 = vst [vmem:[#allocation4 + $0x18] sm:$0xff] 0.0
          %511 = vst [vmem:[#allocation4 + $0x20] sm:$0xff] 0.0
          %512 = vst [vmem:[#allocation4 + $0x28] sm:$0xff] 0.0
          %513 = vst [vmem:[#allocation4 + $0x30] sm:$0xff] 0.0
          %514 = vst [vmem:[#allocation4 + $0x38] sm:$0xff] 0.0
        $region120: #{tpu_custom_call.1} parent=107 // pred_fallthru
          _
        %v515 = vld [vmem:[%s390] sm:$0xff]
        %v516 = vld [vmem:[%s390 + $0x8] sm:$0xff]
        %v517 = vld [vmem:[%s390 + $0x10] sm:$0xff]
        %v518 = vld [vmem:[%s390 + $0x18] sm:$0xff]
        %v519 = vld [vmem:[%s466] sm:$0xff]
        %v520 = vld [vmem:[%s466 + $0x8] sm:$0xff]
        %v521 = vld [vmem:[%s466 + $0x10] sm:$0xff]
        %v522 = vld [vmem:[%s466 + $0x18] sm:$0xff]
        %v523 = vld [vmem:[%s466 + $0x20] sm:$0xff]
        %v524 = vld [vmem:[%s466 + $0x28] sm:$0xff]
        %v525 = vld [vmem:[%s466 + $0x30] sm:$0xff]
        %v526 = vld [vmem:[%s466 + $0x38] sm:$0xff]
        %v527 = vld [vmem:[%s397] sm:$0xff]
        %v528 = vld [vmem:[%s397 + $0x8] sm:$0xff]
        %v529 = vld [vmem:[%s397 + $0x10] sm:$0xff]
        %v530 = vld [vmem:[%s397 + $0x18] sm:$0xff]
        %vm531 = vcmask 179200
        %v533 = vsel %vm531, %v515, 0
        %v536 = vsel %vm531, %v519, 0
        %v539 = vsel %vm531, %v520, 0
        %541 = vmatprep.subr.mxu0 0.0
        %542 = vmatpush1.xpose.msra.mxu0 %v536
        %543 = vmatprep.subr.mxu0 0.0
        %544 = vmatpush1.xpose.msra.mxu0 %v539
        %545 = vmatprep.subr.mxu0 0.0
        %546 = vmatpush1.xpose.msra.mxu0 0.0
        %547 = vmatprep.subr.mxu0 0.0
        %548 = vmatpush1.xpose.msra.mxu0 0.0
        %549 = vmatprep.subr.mxu0 0.0
        %550 = vmatpush1.xpose.msra.mxu0 0.0
        %551 = vmatprep.subr.mxu0 0.0
        %552 = vmatpush1.xpose.msra.mxu0 0.0
        %553 = vmatprep.subr.mxu0 0.0
        %554 = vmatpush1.xpose.msra.mxu0 0.0
        %555 = vmatprep.subr.mxu0 0.0
        %556 = vmatpush1.xpose.msra.mxu0 0.0
        %557 = vmatprep.subr.mxu0 0.0
        %558 = vmatpush1.xpose.msra.mxu0 0.0
        %559 = vmatprep.subr.mxu0 0.0
        %560 = vmatpush1.xpose.msra.mxu0 0.0
        %561 = vmatprep.subr.mxu0 0.0
        %562 = vmatpush1.xpose.msra.mxu0 0.0
        %563 = vmatprep.subr.mxu0 0.0
        %564 = vmatpush1.xpose.msra.mxu0 0.0
        %565 = vmatprep.subr.mxu0 0.0
        %566 = vmatpush1.xpose.msra.mxu0 0.0
        %567 = vmatprep.subr.mxu0 0.0
        %568 = vmatpush1.xpose.msra.mxu0 0.0
        %569 = vmatprep.subr.mxu0 0.0
        %570 = vmatpush1.xpose.msra.mxu0 0.0
        %571 = vmatprep.subr.mxu0 0.0
        %572 = vmatpush1.xpose.msra.mxu0 0.0
        %573 = vmatprep.subr.mxu0 0.0
        %574 = vmatpush1.xpose.msra.mxu0 0.0
        %575 = vmatprep.subr.mxu0 0.0
        %576 = vmatpush1.xpose.msra.mxu0 0.0
        %577 = vmatprep.subr.mxu0 0.0
        %578 = vmatpush1.xpose.msra.mxu0 0.0
        %579 = vmatprep.subr.mxu0 0.0
        %580 = vmatpush1.xpose.msra.mxu0 0.0
        %581 = vmatprep.subr.mxu0 0.0
        %582 = vmatpush1.xpose.msra.mxu0 0.0
        %583 = vmatprep.subr.mxu0 0.0
        %584 = vmatpush1.xpose.msra.mxu0 0.0
        %585 = vmatprep.subr.mxu0 0.0
        %586 = vmatpush1.xpose.msra.mxu0 0.0
        %587 = vmatprep.subr.mxu0 0.0
        %588 = vmatpush1.xpose.msra.mxu0 0.0
        %589 = vmatprep.subr.mxu0 0.0
        %590 = vmatpush1.xpose.msra.mxu0 0.0
        %591 = vmatprep.subr.mxu0 0.0
        %592 = vmatpush1.xpose.msra.mxu0 0.0
        %593 = vmatprep.subr.mxu0 0.0
        %594 = vmatpush1.xpose.msra.mxu0 0.0
        %595 = vmatprep.subr.mxu0 0.0
        %596 = vmatpush1.xpose.msra.mxu0 0.0
        %597 = vmatprep.subr.mxu0 0.0
        %598 = vmatpush1.xpose.msra.mxu0 0.0
        %599 = vmatprep.subr.mxu0 0.0
        %600 = vmatpush1.xpose.msra.mxu0 0.0
        %601 = vmatprep.subr.mxu0 0.0
        %602 = vmatpush1.xpose.msra.mxu0 0.0
        %603 = vmatprep.subr.mxu0 0.0
        %604 = vmatpush1.xpose.msra.mxu0 0.0
        %605 = vmatprep.mubr.f32.mxu0 0.0
        %606 = vmatmul.mubr.f32.gmra.mrb[0].mxu0 %v533
        %v607 = vpop.f32.mrb[0].mxu0
        %v608 = vadd.f32 %v527, %v607
        %v609 = vpop.f32.mrb[0].mxu0
        %610 = vdwg.mxu0
        %v612 = vsel %vm531, %v516, 0
        %v615 = vsel %vm531, %v521, 0
        %v618 = vsel %vm531, %v522, 0
        %620 = vmatprep.subr.mxu0 0.0
        %621 = vmatpush1.xpose.msra.mxu0 %v615
        %622 = vmatprep.subr.mxu0 0.0
        %623 = vmatpush1.xpose.msra.mxu0 %v618
        %624 = vmatprep.subr.mxu0 0.0
        %625 = vmatpush1.xpose.msra.mxu0 0.0
        %626 = vmatprep.subr.mxu0 0.0
        %627 = vmatpush1.xpose.msra.mxu0 0.0
        %628 = vmatprep.subr.mxu0 0.0
        %629 = vmatpush1.xpose.msra.mxu0 0.0
        %630 = vmatprep.subr.mxu0 0.0
        %631 = vmatpush1.xpose.msra.mxu0 0.0
        %632 = vmatprep.subr.mxu0 0.0
        %633 = vmatpush1.xpose.msra.mxu0 0.0
        %634 = vmatprep.subr.mxu0 0.0
        %635 = vmatpush1.xpose.msra.mxu0 0.0
        %636 = vmatprep.subr.mxu0 0.0
        %637 = vmatpush1.xpose.msra.mxu0 0.0
        %638 = vmatprep.subr.mxu0 0.0
        %639 = vmatpush1.xpose.msra.mxu0 0.0
        %640 = vmatprep.subr.mxu0 0.0
        %641 = vmatpush1.xpose.msra.mxu0 0.0
        %642 = vmatprep.subr.mxu0 0.0
        %643 = vmatpush1.xpose.msra.mxu0 0.0
        %644 = vmatprep.subr.mxu0 0.0
        %645 = vmatpush1.xpose.msra.mxu0 0.0
        %646 = vmatprep.subr.mxu0 0.0
        %647 = vmatpush1.xpose.msra.mxu0 0.0
        %648 = vmatprep.subr.mxu0 0.0
        %649 = vmatpush1.xpose.msra.mxu0 0.0
        %650 = vmatprep.subr.mxu0 0.0
        %651 = vmatpush1.xpose.msra.mxu0 0.0
        %652 = vmatprep.subr.mxu0 0.0
        %653 = vmatpush1.xpose.msra.mxu0 0.0
        %654 = vmatprep.subr.mxu0 0.0
        %655 = vmatpush1.xpose.msra.mxu0 0.0
        %656 = vmatprep.subr.mxu0 0.0
        %657 = vmatpush1.xpose.msra.mxu0 0.0
        %658 = vmatprep.subr.mxu0 0.0
        %659 = vmatpush1.xpose.msra.mxu0 0.0
        %660 = vmatprep.subr.mxu0 0.0
        %661 = vmatpush1.xpose.msra.mxu0 0.0
        %662 = vmatprep.subr.mxu0 0.0
        %663 = vmatpush1.xpose.msra.mxu0 0.0
        %664 = vmatprep.subr.mxu0 0.0
        %665 = vmatpush1.xpose.msra.mxu0 0.0
        %666 = vmatprep.subr.mxu0 0.0
        %667 = vmatpush1.xpose.msra.mxu0 0.0
        %668 = vmatprep.subr.mxu0 0.0
        %669 = vmatpush1.xpose.msra.mxu0 0.0
        %670 = vmatprep.subr.mxu0 0.0
        %671 = vmatpush1.xpose.msra.mxu0 0.0
        %672 = vmatprep.subr.mxu0 0.0
        %673 = vmatpush1.xpose.msra.mxu0 0.0
        %674 = vmatprep.subr.mxu0 0.0
        %675 = vmatpush1.xpose.msra.mxu0 0.0
        %676 = vmatprep.subr.mxu0 0.0
        %677 = vmatpush1.xpose.msra.mxu0 0.0
        %678 = vmatprep.subr.mxu0 0.0
        %679 = vmatpush1.xpose.msra.mxu0 0.0
        %680 = vmatprep.subr.mxu0 0.0
        %681 = vmatpush1.xpose.msra.mxu0 0.0
        %682 = vmatprep.subr.mxu0 0.0
        %683 = vmatpush1.xpose.msra.mxu0 0.0
        %684 = vmatprep.mubr.f32.mxu0 0.0
        %685 = vmatmul.mubr.f32.gmra.mrb[0].mxu0 %v612
        %v686 = vpop.f32.mrb[0].mxu0
        %v687 = vadd.f32 %v528, %v686
        %v688 = vpop.f32.mrb[0].mxu0
        %689 = vdwg.mxu0
        %v691 = vsel %vm531, %v517, 0
        %v694 = vsel %vm531, %v523, 0
        %v697 = vsel %vm531, %v524, 0
        %699 = vmatprep.subr.mxu0 0.0
        %700 = vmatpush1.xpose.msra.mxu0 %v694
        %701 = vmatprep.subr.mxu0 0.0
        %702 = vmatpush1.xpose.msra.mxu0 %v697
        %703 = vmatprep.subr.mxu0 0.0
        %704 = vmatpush1.xpose.msra.mxu0 0.0
        %705 = vmatprep.subr.mxu0 0.0
        %706 = vmatpush1.xpose.msra.mxu0 0.0
        %707 = vmatprep.subr.mxu0 0.0
        %708 = vmatpush1.xpose.msra.mxu0 0.0
        %709 = vmatprep.subr.mxu0 0.0
        %710 = vmatpush1.xpose.msra.mxu0 0.0
        %711 = vmatprep.subr.mxu0 0.0
        %712 = vmatpush1.xpose.msra.mxu0 0.0
        %713 = vmatprep.subr.mxu0 0.0
        %714 = vmatpush1.xpose.msra.mxu0 0.0
        %715 = vmatprep.subr.mxu0 0.0
        %716 = vmatpush1.xpose.msra.mxu0 0.0
        %717 = vmatprep.subr.mxu0 0.0
        %718 = vmatpush1.xpose.msra.mxu0 0.0
        %719 = vmatprep.subr.mxu0 0.0
        %720 = vmatpush1.xpose.msra.mxu0 0.0
        %721 = vmatprep.subr.mxu0 0.0
        %722 = vmatpush1.xpose.msra.mxu0 0.0
        %723 = vmatprep.subr.mxu0 0.0
        %724 = vmatpush1.xpose.msra.mxu0 0.0
        %725 = vmatprep.subr.mxu0 0.0
        %726 = vmatpush1.xpose.msra.mxu0 0.0
        %727 = vmatprep.subr.mxu0 0.0
        %728 = vmatpush1.xpose.msra.mxu0 0.0
        %729 = vmatprep.subr.mxu0 0.0
        %730 = vmatpush1.xpose.msra.mxu0 0.0
        %731 = vmatprep.subr.mxu0 0.0
        %732 = vmatpush1.xpose.msra.mxu0 0.0
        %733 = vmatprep.subr.mxu0 0.0
        %734 = vmatpush1.xpose.msra.mxu0 0.0
        %735 = vmatprep.subr.mxu0 0.0
        %736 = vmatpush1.xpose.msra.mxu0 0.0
        %737 = vmatprep.subr.mxu0 0.0
        %738 = vmatpush1.xpose.msra.mxu0 0.0
        %739 = vmatprep.subr.mxu0 0.0
        %740 = vmatpush1.xpose.msra.mxu0 0.0
        %741 = vmatprep.subr.mxu0 0.0
        %742 = vmatpush1.xpose.msra.mxu0 0.0
        %743 = vmatprep.subr.mxu0 0.0
        %744 = vmatpush1.xpose.msra.mxu0 0.0
        %745 = vmatprep.subr.mxu0 0.0
        %746 = vmatpush1.xpose.msra.mxu0 0.0
        %747 = vmatprep.subr.mxu0 0.0
        %748 = vmatpush1.xpose.msra.mxu0 0.0
        %749 = vmatprep.subr.mxu0 0.0
        %750 = vmatpush1.xpose.msra.mxu0 0.0
        %751 = vmatprep.subr.mxu0 0.0
        %752 = vmatpush1.xpose.msra.mxu0 0.0
        %753 = vmatprep.subr.mxu0 0.0
        %754 = vmatpush1.xpose.msra.mxu0 0.0
        %755 = vmatprep.subr.mxu0 0.0
        %756 = vmatpush1.xpose.msra.mxu0 0.0
        %757 = vmatprep.subr.mxu0 0.0
        %758 = vmatpush1.xpose.msra.mxu0 0.0
        %759 = vmatprep.subr.mxu0 0.0
        %760 = vmatpush1.xpose.msra.mxu0 0.0
        %761 = vmatprep.subr.mxu0 0.0
        %762 = vmatpush1.xpose.msra.mxu0 0.0
        %763 = vmatprep.mubr.f32.mxu0 0.0
        %764 = vmatmul.mubr.f32.gmra.mrb[0].mxu0 %v691
        %v765 = vpop.f32.mrb[0].mxu0
        %v766 = vadd.f32 %v529, %v765
        %v767 = vpop.f32.mrb[0].mxu0
        %768 = vdwg.mxu0
        %v770 = vsel %vm531, %v518, 0
        %v773 = vsel %vm531, %v525, 0
        %v776 = vsel %vm531, %v526, 0
        %778 = vmatprep.subr.mxu0 0.0
        %779 = vmatpush1.xpose.msra.mxu0 %v773
        %780 = vmatprep.subr.mxu0 0.0
        %781 = vmatpush1.xpose.msra.mxu0 %v776
        %782 = vmatprep.subr.mxu0 0.0
        %783 = vmatpush1.xpose.msra.mxu0 0.0
        %784 = vmatprep.subr.mxu0 0.0
        %785 = vmatpush1.xpose.msra.mxu0 0.0
        %786 = vmatprep.subr.mxu0 0.0
        %787 = vmatpush1.xpose.msra.mxu0 0.0
        %788 = vmatprep.subr.mxu0 0.0
        %789 = vmatpush1.xpose.msra.mxu0 0.0
        %790 = vmatprep.subr.mxu0 0.0
        %791 = vmatpush1.xpose.msra.mxu0 0.0
        %792 = vmatprep.subr.mxu0 0.0
        %793 = vmatpush1.xpose.msra.mxu0 0.0
        %794 = vmatprep.subr.mxu0 0.0
        %795 = vmatpush1.xpose.msra.mxu0 0.0
        %796 = vmatprep.subr.mxu0 0.0
        %797 = vmatpush1.xpose.msra.mxu0 0.0
        %798 = vmatprep.subr.mxu0 0.0
        %799 = vmatpush1.xpose.msra.mxu0 0.0
        %800 = vmatprep.subr.mxu0 0.0
        %801 = vmatpush1.xpose.msra.mxu0 0.0
        %802 = vmatprep.subr.mxu0 0.0
        %803 = vmatpush1.xpose.msra.mxu0 0.0
        %804 = vmatprep.subr.mxu0 0.0
        %805 = vmatpush1.xpose.msra.mxu0 0.0
        %806 = vmatprep.subr.mxu0 0.0
        %807 = vmatpush1.xpose.msra.mxu0 0.0
        %808 = vmatprep.subr.mxu0 0.0
        %809 = vmatpush1.xpose.msra.mxu0 0.0
        %810 = vmatprep.subr.mxu0 0.0
        %811 = vmatpush1.xpose.msra.mxu0 0.0
        %812 = vmatprep.subr.mxu0 0.0
        %813 = vmatpush1.xpose.msra.mxu0 0.0
        %814 = vmatprep.subr.mxu0 0.0
        %815 = vmatpush1.xpose.msra.mxu0 0.0
        %816 = vmatprep.subr.mxu0 0.0
        %817 = vmatpush1.xpose.msra.mxu0 0.0
        %818 = vmatprep.subr.mxu0 0.0
        %819 = vmatpush1.xpose.msra.mxu0 0.0
        %820 = vmatprep.subr.mxu0 0.0
        %821 = vmatpush1.xpose.msra.mxu0 0.0
        %822 = vmatprep.subr.mxu0 0.0
        %823 = vmatpush1.xpose.msra.mxu0 0.0
        %824 = vmatprep.subr.mxu0 0.0
        %825 = vmatpush1.xpose.msra.mxu0 0.0
        %826 = vmatprep.subr.mxu0 0.0
        %827 = vmatpush1.xpose.msra.mxu0 0.0
        %828 = vmatprep.subr.mxu0 0.0
        %829 = vmatpush1.xpose.msra.mxu0 0.0
        %830 = vmatprep.subr.mxu0 0.0
        %831 = vmatpush1.xpose.msra.mxu0 0.0
        %832 = vmatprep.subr.mxu0 0.0
        %833 = vmatpush1.xpose.msra.mxu0 0.0
        %834 = vmatprep.subr.mxu0 0.0
        %835 = vmatpush1.xpose.msra.mxu0 0.0
        %836 = vmatprep.subr.mxu0 0.0
        %837 = vmatpush1.xpose.msra.mxu0 0.0
        %838 = vmatprep.subr.mxu0 0.0
        %839 = vmatpush1.xpose.msra.mxu0 0.0
        %840 = vmatprep.subr.mxu0 0.0
        %841 = vmatpush1.xpose.msra.mxu0 0.0
        %842 = vmatprep.mubr.f32.mxu0 0.0
        %843 = vmatmul.mubr.f32.gmra.mrb[0].mxu0 %v770
        %v844 = vpop.f32.mrb[0].mxu0
        %v845 = vadd.f32 %v530, %v844
        %v846 = vpop.f32.mrb[0].mxu0
        %847 = vdwg.mxu0
        %v848 = vld [vmem:[#allocation2] sm:$0xff]
        %v849 = vld [vmem:[#allocation2 + $0x8] sm:$0xff]
        %v850 = vld [vmem:[#allocation2 + $0x10] sm:$0xff]
        %v851 = vld [vmem:[#allocation2 + $0x18] sm:$0xff]
        %vm852 = vcmask 130048
        %v853 = vsel %vm852, %v608, -inf
        %854 = vmax.xlane.f32.xlu0 %v853
        %v855 = vpop.xlane.xlu0 %854
        %v856 = vsel %vm852, %v687, -inf
        %857 = vmax.xlane.f32.xlu0 %v856
        %v858 = vpop.xlane.xlu0 %857
        %v859 = vsel %vm852, %v766, -inf
        %860 = vmax.xlane.f32.xlu0 %v859
        %v861 = vpop.xlane.xlu0 %860
        %v862 = vsel %vm852, %v845, -inf
        %863 = vmax.xlane.f32.xlu0 %v862
        %v864 = vpop.xlane.xlu0 %863
        %v865 = vmax.f32 %v848, %v855
        %v866 = vmax.f32 %v849, %v858
        %v867 = vmax.f32 %v850, %v861
        %v868 = vmax.f32 %v851, %v864
        %v869 = vsub.f32 %v848, %v865
        %v870 = vsub.f32 %v849, %v866
        %v871 = vsub.f32 %v850, %v867
        %v872 = vsub.f32 %v851, %v868
        %v873 = vmul.f32 %v869, 1.442695
        %v874 = vpow.pop %v873
        %v875 = vmul.f32 %v870, 1.442695
        %v876 = vpow.pop %v875
        %v877 = vmul.f32 %v871, 1.442695
        %v878 = vpow.pop %v877
        %v879 = vmul.f32 %v872, 1.442695
        %v880 = vpow.pop %v879
        %882 = vset.pattern.permute.xlu0 0
        %883 = vperm.xlu0 %882, %v865
        %v884 = vpop.permute.xlu0 %883
        %887 = vset.pattern.permute.xlu0 0
        %888 = vperm.xlu0 %887, %v866
        %v889 = vpop.permute.xlu0 %888
        %892 = vset.pattern.permute.xlu0 0
        %893 = vperm.xlu0 %892, %v867
        %v894 = vpop.permute.xlu0 %893
        %897 = vset.pattern.permute.xlu0 0
        %898 = vperm.xlu0 %897, %v868
        %v899 = vpop.permute.xlu0 %898
        %v901 = vsub.f32 %v608, %v884
        %v902 = vsub.f32 %v687, %v889
        %v903 = vsub.f32 %v766, %v894
        %v904 = vsub.f32 %v845, %v899
        %v905 = vmul.f32 %v901, 1.442695
        %v906 = vpow.pop %v905
        %v907 = vmul.f32 %v902, 1.442695
        %v908 = vpow.pop %v907
        %v909 = vmul.f32 %v903, 1.442695
        %v910 = vpow.pop %v909
        %v911 = vmul.f32 %v904, 1.442695
        %v912 = vpow.pop %v911
        %vm913 = vcmask 7168
        %914 = vst.msk [vmem:[#allocation2] sm:$0xff] %vm913, %v865
        %915 = vst.msk [vmem:[#allocation2 + $0x8] sm:$0xff] %vm913, %v866
        %916 = vst.msk [vmem:[#allocation2 + $0x10] sm:$0xff] %vm913, %v867
        %917 = vst.msk [vmem:[#allocation2 + $0x18] sm:$0xff] %vm913, %v868
        %v918 = vld [vmem:[#allocation3] sm:$0xff]
        %v919 = vld [vmem:[#allocation3 + $0x8] sm:$0xff]
        %v920 = vld [vmem:[#allocation3 + $0x10] sm:$0xff]
        %v921 = vld [vmem:[#allocation3 + $0x18] sm:$0xff]
        %v922 = vmul.f32 %v874, %v918
        %v923 = vmul.f32 %v876, %v919
        %v924 = vmul.f32 %v878, %v920
        %v925 = vmul.f32 %v880, %v921
        %v926 = vsel %vm852, %v906, 0.0
        %927 = vadd.xlane.f32.xlu0 %v926
        %v928 = vpop.xlane.xlu0 %927
        %v929 = vsel %vm852, %v908, 0.0
        %930 = vadd.xlane.f32.xlu0 %v929
        %v931 = vpop.xlane.xlu0 %930
        %v932 = vsel %vm852, %v910, 0.0
        %933 = vadd.xlane.f32.xlu0 %v932
        %v934 = vpop.xlane.xlu0 %933
        %v935 = vsel %vm852, %v912, 0.0
        %936 = vadd.xlane.f32.xlu0 %v935
        %v937 = vpop.xlane.xlu0 %936
        %v938 = vadd.f32 %v922, %v928
        %v939 = vadd.f32 %v923, %v931
        %v940 = vadd.f32 %v924, %v934
        %v941 = vadd.f32 %v925, %v937
        %942 = vst.msk [vmem:[#allocation3] sm:$0xff] %vm913, %v938
        %943 = vst.msk [vmem:[#allocation3 + $0x8] sm:$0xff] %vm913, %v939
        %944 = vst.msk [vmem:[#allocation3 + $0x10] sm:$0xff] %vm913, %v940
        %945 = vst.msk [vmem:[#allocation3 + $0x18] sm:$0xff] %vm913, %v941
        %v946 = vld [vmem:[%s476] sm:$0xff]
        %v947 = vld [vmem:[%s476 + $0x8] sm:$0xff]
        %v948 = vld [vmem:[%s476 + $0x10] sm:$0xff]
        %v949 = vld [vmem:[%s476 + $0x18] sm:$0xff]
        %v950 = vld [vmem:[%s476 + $0x20] sm:$0xff]
        %v951 = vld [vmem:[%s476 + $0x28] sm:$0xff]
        %v952 = vld [vmem:[%s476 + $0x30] sm:$0xff]
        %v953 = vld [vmem:[%s476 + $0x38] sm:$0xff]
        %v955 = vsel %vm852, %v906, 0
        %957 = vmatprep.subr.mxu0 0.0
        %958 = vmatpush1.msra.mxu0 %v946
        %959 = vmatprep.subr.mxu0 0.0
        %960 = vmatpush1.msra.mxu0 %v947
        %961 = vmatprep.subr.mxu0 0.0
        %962 = vmatpush1.msra.mxu0 0.0
        %963 = vmatprep.subr.mxu0 0.0
        %964 = vmatpush1.msra.mxu0 0.0
        %965 = vmatprep.subr.mxu0 0.0
        %966 = vmatpush1.msra.mxu0 0.0
        %967 = vmatprep.subr.mxu0 0.0
        %968 = vmatpush1.msra.mxu0 0.0
        %969 = vmatprep.subr.mxu0 0.0
        %970 = vmatpush1.msra.mxu0 0.0
        %971 = vmatprep.subr.mxu0 0.0
        %972 = vmatpush1.msra.mxu0 0.0
        %973 = vmatprep.subr.mxu0 0.0
        %974 = vmatpush1.msra.mxu0 0.0
        %975 = vmatprep.subr.mxu0 0.0
        %976 = vmatpush1.msra.mxu0 0.0
        %977 = vmatprep.subr.mxu0 0.0
        %978 = vmatpush1.msra.mxu0 0.0
        %979 = vmatprep.subr.mxu0 0.0
        %980 = vmatpush1.msra.mxu0 0.0
        %981 = vmatprep.subr.mxu0 0.0
        %982 = vmatpush1.msra.mxu0 0.0
        %983 = vmatprep.subr.mxu0 0.0
        %984 = vmatpush1.msra.mxu0 0.0
        %985 = vmatprep.subr.mxu0 0.0
        %986 = vmatpush1.msra.mxu0 0.0
        %987 = vmatprep.subr.mxu0 0.0
        %988 = vmatpush1.msra.mxu0 0.0
        %989 = vmatprep.subr.mxu0 0.0
        %990 = vmatpush1.msra.mxu0 0.0
        %991 = vmatprep.subr.mxu0 0.0
        %992 = vmatpush1.msra.mxu0 0.0
        %993 = vmatprep.subr.mxu0 0.0
        %994 = vmatpush1.msra.mxu0 0.0
        %995 = vmatprep.subr.mxu0 0.0
        %996 = vmatpush1.msra.mxu0 0.0
        %997 = vmatprep.subr.mxu0 0.0
        %998 = vmatpush1.msra.mxu0 0.0
        %999 = vmatprep.subr.mxu0 0.0
        %1000 = vmatpush1.msra.mxu0 0.0
        %1001 = vmatprep.subr.mxu0 0.0
        %1002 = vmatpush1.msra.mxu0 0.0
        %1003 = vmatprep.subr.mxu0 0.0
        %1004 = vmatpush1.msra.mxu0 0.0
        %1005 = vmatprep.subr.mxu0 0.0
        %1006 = vmatpush1.msra.mxu0 0.0
        %1007 = vmatprep.subr.mxu0 0.0
        %1008 = vmatpush1.msra.mxu0 0.0
        %1009 = vmatprep.subr.mxu0 0.0
        %1010 = vmatpush1.msra.mxu0 0.0
        %1011 = vmatprep.subr.mxu0 0.0
        %1012 = vmatpush1.msra.mxu0 0.0
        %1013 = vmatprep.subr.mxu0 0.0
        %1014 = vmatpush1.msra.mxu0 0.0
        %1015 = vmatprep.subr.mxu0 0.0
        %1016 = vmatpush1.msra.mxu0 0.0
        %1017 = vmatprep.subr.mxu0 0.0
        %1018 = vmatpush1.msra.mxu0 0.0
        %1019 = vmatprep.subr.mxu0 0.0
        %1020 = vmatpush1.msra.mxu0 0.0
        %1021 = vmatprep.mubr.f32.mxu0 0.0
        %1022 = vmatmul.mubr.f32.gmra.mrb[0].mxu0 %v955
        %v1023 = vpop.f32.mrb[0].mxu0
        %v1024 = vadd.f32 0.0, %v1023
        %v1025 = vpop.f32.mrb[0].mxu0
        %1026 = vdwg.mxu0
        %v1028 = vsel %vm852, %v908, 0
        %1030 = vmatprep.subr.mxu0 0.0
        %1031 = vmatpush1.msra.mxu0 %v948
        %1032 = vmatprep.subr.mxu0 0.0
        %1033 = vmatpush1.msra.mxu0 %v949
        %1034 = vmatprep.subr.mxu0 0.0
        %1035 = vmatpush1.msra.mxu0 0.0
        %1036 = vmatprep.subr.mxu0 0.0
        %1037 = vmatpush1.msra.mxu0 0.0
        %1038 = vmatprep.subr.mxu0 0.0
        %1039 = vmatpush1.msra.mxu0 0.0
        %1040 = vmatprep.subr.mxu0 0.0
        %1041 = vmatpush1.msra.mxu0 0.0
        %1042 = vmatprep.subr.mxu0 0.0
        %1043 = vmatpush1.msra.mxu0 0.0
        %1044 = vmatprep.subr.mxu0 0.0
        %1045 = vmatpush1.msra.mxu0 0.0
        %1046 = vmatprep.subr.mxu0 0.0
        %1047 = vmatpush1.msra.mxu0 0.0
        %1048 = vmatprep.subr.mxu0 0.0
        %1049 = vmatpush1.msra.mxu0 0.0
        %1050 = vmatprep.subr.mxu0 0.0
        %1051 = vmatpush1.msra.mxu0 0.0
        %1052 = vmatprep.subr.mxu0 0.0
        %1053 = vmatpush1.msra.mxu0 0.0
        %1054 = vmatprep.subr.mxu0 0.0
        %1055 = vmatpush1.msra.mxu0 0.0
        %1056 = vmatprep.subr.mxu0 0.0
        %1057 = vmatpush1.msra.mxu0 0.0
        %1058 = vmatprep.subr.mxu0 0.0
        %1059 = vmatpush1.msra.mxu0 0.0
        %1060 = vmatprep.subr.mxu0 0.0
        %1061 = vmatpush1.msra.mxu0 0.0
        %1062 = vmatprep.subr.mxu0 0.0
        %1063 = vmatpush1.msra.mxu0 0.0
        %1064 = vmatprep.subr.mxu0 0.0
        %1065 = vmatpush1.msra.mxu0 0.0
        %1066 = vmatprep.subr.mxu0 0.0
        %1067 = vmatpush1.msra.mxu0 0.0
        %1068 = vmatprep.subr.mxu0 0.0
        %1069 = vmatpush1.msra.mxu0 0.0
        %1070 = vmatprep.subr.mxu0 0.0
        %1071 = vmatpush1.msra.mxu0 0.0
        %1072 = vmatprep.subr.mxu0 0.0
        %1073 = vmatpush1.msra.mxu0 0.0
        %1074 = vmatprep.subr.mxu0 0.0
        %1075 = vmatpush1.msra.mxu0 0.0
        %1076 = vmatprep.subr.mxu0 0.0
        %1077 = vmatpush1.msra.mxu0 0.0
        %1078 = vmatprep.subr.mxu0 0.0
        %1079 = vmatpush1.msra.mxu0 0.0
        %1080 = vmatprep.subr.mxu0 0.0
        %1081 = vmatpush1.msra.mxu0 0.0
        %1082 = vmatprep.subr.mxu0 0.0
        %1083 = vmatpush1.msra.mxu0 0.0
        %1084 = vmatprep.subr.mxu0 0.0
        %1085 = vmatpush1.msra.mxu0 0.0
        %1086 = vmatprep.subr.mxu0 0.0
        %1087 = vmatpush1.msra.mxu0 0.0
        %1088 = vmatprep.subr.mxu0 0.0
        %1089 = vmatpush1.msra.mxu0 0.0
        %1090 = vmatprep.subr.mxu0 0.0
        %1091 = vmatpush1.msra.mxu0 0.0
        %1092 = vmatprep.subr.mxu0 0.0
        %1093 = vmatpush1.msra.mxu0 0.0
        %1094 = vmatprep.mubr.f32.mxu0 0.0
        %1095 = vmatmul.mubr.f32.gmra.mrb[0].mxu0 %v1028
        %v1096 = vpop.f32.mrb[0].mxu0
        %v1097 = vadd.f32 0.0, %v1096
        %v1098 = vpop.f32.mrb[0].mxu0
        %1099 = vdwg.mxu0
        %v1101 = vsel %vm852, %v910, 0
        %1103 = vmatprep.subr.mxu0 0.0
        %1104 = vmatpush1.msra.mxu0 %v950
        %1105 = vmatprep.subr.mxu0 0.0
        %1106 = vmatpush1.msra.mxu0 %v951
        %1107 = vmatprep.subr.mxu0 0.0
        %1108 = vmatpush1.msra.mxu0 0.0
        %1109 = vmatprep.subr.mxu0 0.0
        %1110 = vmatpush1.msra.mxu0 0.0
        %1111 = vmatprep.subr.mxu0 0.0
        %1112 = vmatpush1.msra.mxu0 0.0
        %1113 = vmatprep.subr.mxu0 0.0
        %1114 = vmatpush1.msra.mxu0 0.0
        %1115 = vmatprep.subr.mxu0 0.0
        %1116 = vmatpush1.msra.mxu0 0.0
        %1117 = vmatprep.subr.mxu0 0.0
        %1118 = vmatpush1.msra.mxu0 0.0
        %1119 = vmatprep.subr.mxu0 0.0
        %1120 = vmatpush1.msra.mxu0 0.0
        %1121 = vmatprep.subr.mxu0 0.0
        %1122 = vmatpush1.msra.mxu0 0.0
        %1123 = vmatprep.subr.mxu0 0.0
        %1124 = vmatpush1.msra.mxu0 0.0
        %1125 = vmatprep.subr.mxu0 0.0
        %1126 = vmatpush1.msra.mxu0 0.0
        %1127 = vmatprep.subr.mxu0 0.0
        %1128 = vmatpush1.msra.mxu0 0.0
        %1129 = vmatprep.subr.mxu0 0.0
        %1130 = vmatpush1.msra.mxu0 0.0
        %1131 = vmatprep.subr.mxu0 0.0
        %1132 = vmatpush1.msra.mxu0 0.0
        %1133 = vmatprep.subr.mxu0 0.0
        %1134 = vmatpush1.msra.mxu0 0.0
        %1135 = vmatprep.subr.mxu0 0.0
        %1136 = vmatpush1.msra.mxu0 0.0
        %1137 = vmatprep.subr.mxu0 0.0
        %1138 = vmatpush1.msra.mxu0 0.0
        %1139 = vmatprep.subr.mxu0 0.0
        %1140 = vmatpush1.msra.mxu0 0.0
        %1141 = vmatprep.subr.mxu0 0.0
        %1142 = vmatpush1.msra.mxu0 0.0
        %1143 = vmatprep.subr.mxu0 0.0
        %1144 = vmatpush1.msra.mxu0 0.0
        %1145 = vmatprep.subr.mxu0 0.0
        %1146 = vmatpush1.msra.mxu0 0.0
        %1147 = vmatprep.subr.mxu0 0.0
        %1148 = vmatpush1.msra.mxu0 0.0
        %1149 = vmatprep.subr.mxu0 0.0
        %1150 = vmatpush1.msra.mxu0 0.0
        %1151 = vmatprep.subr.mxu0 0.0
        %1152 = vmatpush1.msra.mxu0 0.0
        %1153 = vmatprep.subr.mxu0 0.0
        %1154 = vmatpush1.msra.mxu0 0.0
        %1155 = vmatprep.subr.mxu0 0.0
        %1156 = vmatpush1.msra.mxu0 0.0
        %1157 = vmatprep.subr.mxu0 0.0
        %1158 = vmatpush1.msra.mxu0 0.0
        %1159 = vmatprep.subr.mxu0 0.0
        %1160 = vmatpush1.msra.mxu0 0.0
        %1161 = vmatprep.subr.mxu0 0.0
        %1162 = vmatpush1.msra.mxu0 0.0
        %1163 = vmatprep.subr.mxu0 0.0
        %1164 = vmatpush1.msra.mxu0 0.0
        %1165 = vmatprep.subr.mxu0 0.0
        %1166 = vmatpush1.msra.mxu0 0.0
        %1167 = vmatprep.mubr.f32.mxu0 0.0
        %1168 = vmatmul.mubr.f32.gmra.mrb[0].mxu0 %v1101
        %v1169 = vpop.f32.mrb[0].mxu0
        %v1170 = vadd.f32 0.0, %v1169
        %v1171 = vpop.f32.mrb[0].mxu0
        %1172 = vdwg.mxu0
        %v1174 = vsel %vm852, %v912, 0
        %1176 = vmatprep.subr.mxu0 0.0
        %1177 = vmatpush1.msra.mxu0 %v952
        %1178 = vmatprep.subr.mxu0 0.0
        %1179 = vmatpush1.msra.mxu0 %v953
        %1180 = vmatprep.subr.mxu0 0.0
        %1181 = vmatpush1.msra.mxu0 0.0
        %1182 = vmatprep.subr.mxu0 0.0
        %1183 = vmatpush1.msra.mxu0 0.0
        %1184 = vmatprep.subr.mxu0 0.0
        %1185 = vmatpush1.msra.mxu0 0.0
        %1186 = vmatprep.subr.mxu0 0.0
        %1187 = vmatpush1.msra.mxu0 0.0
        %1188 = vmatprep.subr.mxu0 0.0
        %1189 = vmatpush1.msra.mxu0 0.0
        %1190 = vmatprep.subr.mxu0 0.0
        %1191 = vmatpush1.msra.mxu0 0.0
        %1192 = vmatprep.subr.mxu0 0.0
        %1193 = vmatpush1.msra.mxu0 0.0
        %1194 = vmatprep.subr.mxu0 0.0
        %1195 = vmatpush1.msra.mxu0 0.0
        %1196 = vmatprep.subr.mxu0 0.0
        %1197 = vmatpush1.msra.mxu0 0.0
        %1198 = vmatprep.subr.mxu0 0.0
        %1199 = vmatpush1.msra.mxu0 0.0
        %1200 = vmatprep.subr.mxu0 0.0
        %1201 = vmatpush1.msra.mxu0 0.0
        %1202 = vmatprep.subr.mxu0 0.0
        %1203 = vmatpush1.msra.mxu0 0.0
        %1204 = vmatprep.subr.mxu0 0.0
        %1205 = vmatpush1.msra.mxu0 0.0
        %1206 = vmatprep.subr.mxu0 0.0
        %1207 = vmatpush1.msra.mxu0 0.0
        %1208 = vmatprep.subr.mxu0 0.0
        %1209 = vmatpush1.msra.mxu0 0.0
        %1210 = vmatprep.subr.mxu0 0.0
        %1211 = vmatpush1.msra.mxu0 0.0
        %1212 = vmatprep.subr.mxu0 0.0
        %1213 = vmatpush1.msra.mxu0 0.0
        %1214 = vmatprep.subr.mxu0 0.0
        %1215 = vmatpush1.msra.mxu0 0.0
        %1216 = vmatprep.subr.mxu0 0.0
        %1217 = vmatpush1.msra.mxu0 0.0
        %1218 = vmatprep.subr.mxu0 0.0
        %1219 = vmatpush1.msra.mxu0 0.0
        %1220 = vmatprep.subr.mxu0 0.0
        %1221 = vmatpush1.msra.mxu0 0.0
        %1222 = vmatprep.subr.mxu0 0.0
        %1223 = vmatpush1.msra.mxu0 0.0
        %1224 = vmatprep.subr.mxu0 0.0
        %1225 = vmatpush1.msra.mxu0 0.0
        %1226 = vmatprep.subr.mxu0 0.0
        %1227 = vmatpush1.msra.mxu0 0.0
        %1228 = vmatprep.subr.mxu0 0.0
        %1229 = vmatpush1.msra.mxu0 0.0
        %1230 = vmatprep.subr.mxu0 0.0
        %1231 = vmatpush1.msra.mxu0 0.0
        %1232 = vmatprep.subr.mxu0 0.0
        %1233 = vmatpush1.msra.mxu0 0.0
        %1234 = vmatprep.subr.mxu0 0.0
        %1235 = vmatpush1.msra.mxu0 0.0
        %1236 = vmatprep.subr.mxu0 0.0
        %1237 = vmatpush1.msra.mxu0 0.0
        %1238 = vmatprep.subr.mxu0 0.0
        %1239 = vmatpush1.msra.mxu0 0.0
        %1240 = vmatprep.mubr.f32.mxu0 0.0
        %1241 = vmatmul.mubr.f32.gmra.mrb[0].mxu0 %v1174
        %v1242 = vpop.f32.mrb[0].mxu0
        %v1243 = vadd.f32 0.0, %v1242
        %v1244 = vpop.f32.mrb[0].mxu0
        %1245 = vdwg.mxu0
        %v1246 = vld [vmem:[#allocation4] sm:$0xff]
        %v1247 = vld [vmem:[#allocation4 + $0x10] sm:$0xff]
        %v1248 = vld [vmem:[#allocation4 + $0x20] sm:$0xff]
        %v1249 = vld [vmem:[#allocation4 + $0x30] sm:$0xff]
        %1251 = vset.pattern.permute.xlu0 0
        %1252 = vperm.xlu0 %1251, %v874
        %v1253 = vpop.permute.xlu0 %1252
        %1256 = vset.pattern.permute.xlu0 0
        %1257 = vperm.xlu0 %1256, %v876
        %v1258 = vpop.permute.xlu0 %1257
        %1261 = vset.pattern.permute.xlu0 0
        %1262 = vperm.xlu0 %1261, %v878
        %v1263 = vpop.permute.xlu0 %1262
        %1266 = vset.pattern.permute.xlu0 0
        %1267 = vperm.xlu0 %1266, %v880
        %v1268 = vpop.permute.xlu0 %1267
        %v1270 = vmul.f32 %v1253, %v1246
        %v1271 = vmul.f32 %v1258, %v1247
        %v1272 = vmul.f32 %v1263, %v1248
        %v1273 = vmul.f32 %v1268, %v1249
        %v1274 = vadd.f32 %v1270, %v1024
        %v1275 = vadd.f32 %v1271, %v1097
        %v1276 = vadd.f32 %v1272, %v1170
        %v1277 = vadd.f32 %v1273, %v1243
        %1278 = vst [vmem:[#allocation4] sm:$0xff] %v1274
        %1279 = vst [vmem:[#allocation4 + $0x10] sm:$0xff] %v1275
        %1280 = vst [vmem:[#allocation4 + $0x20] sm:$0xff] %v1276
        %1281 = vst [vmem:[#allocation4 + $0x30] sm:$0xff] %v1277
        %v1282 = vld [vmem:[%s491] sm:$0xff]
        %v1283 = vld [vmem:[%s491 + $0x8] sm:$0xff]
        %v1284 = vld [vmem:[%s491 + $0x10] sm:$0xff]
        %v1285 = vld [vmem:[%s491 + $0x18] sm:$0xff]
        %v1286 = vld [vmem:[%s491 + $0x20] sm:$0xff]
        %v1287 = vld [vmem:[%s491 + $0x28] sm:$0xff]
        %v1288 = vld [vmem:[%s491 + $0x30] sm:$0xff]
        %v1289 = vld [vmem:[%s491 + $0x38] sm:$0xff]
        %v1290 = vld [vmem:[%s491 + $0x40] sm:$0xff]
        %v1291 = vld [vmem:[%s491 + $0x48] sm:$0xff]
        %v1292 = vld [vmem:[%s491 + $0x50] sm:$0xff]
        %v1293 = vld [vmem:[%s491 + $0x58] sm:$0xff]
        %v1294 = vld [vmem:[%s491 + $0x60] sm:$0xff]
        %v1295 = vld [vmem:[%s491 + $0x68] sm:$0xff]
        %v1296 = vld [vmem:[%s491 + $0x70] sm:$0xff]
        %v1297 = vld [vmem:[%s491 + $0x78] sm:$0xff]
        %v1298 = vlaneseq
        %v1299 = vshrl.u32 %v1298, 7
        %v1300 = vsub.s32 0, %v1299
        %v1301 = vrot.slane %v906, %v1300
        %1303 = vbcast.lane.b32.xlu0 %v1301, 256
        %v1304 = vpop.permute.xlu0 %1303
        %s1306 = sor.u32 256, 8
        %1307 = vbcast.lane.b32.xlu0 %v1301, %s1306
        %v1308 = vpop.permute.xlu0 %1307
        %v1309 = vlaneseq
        %v1310 = vshrl.u32 %v1309, 7
        %v1311 = vsub.s32 1, %v1310
        %v1312 = vrot.slane %v906, %v1311
        %1314 = vbcast.lane.b32.xlu0 %v1312, 256
        %v1315 = vpop.permute.xlu0 %1314
        %s1317 = sor.u32 256, 8
        %1318 = vbcast.lane.b32.xlu0 %v1312, %s1317
        %v1319 = vpop.permute.xlu0 %1318
        %v1320 = vlaneseq
        %v1321 = vshrl.u32 %v1320, 7
        %v1322 = vsub.s32 2, %v1321
        %v1323 = vrot.slane %v906, %v1322
        %1325 = vbcast.lane.b32.xlu0 %v1323, 256
        %v1326 = vpop.permute.xlu0 %1325
        %s1328 = sor.u32 256, 8
        %1329 = vbcast.lane.b32.xlu0 %v1323, %s1328
        %v1330 = vpop.permute.xlu0 %1329
        %v1331 = vlaneseq
        %v1332 = vshrl.u32 %v1331, 7
        %v1333 = vsub.s32 3, %v1332
        %v1334 = vrot.slane %v906, %v1333
        %1336 = vbcast.lane.b32.xlu0 %v1334, 256
        %v1337 = vpop.permute.xlu0 %1336
        %s1339 = sor.u32 256, 8
        %1340 = vbcast.lane.b32.xlu0 %v1334, %s1339
        %v1341 = vpop.permute.xlu0 %1340
        %v1342 = vlaneseq
        %v1343 = vshrl.u32 %v1342, 7
        %v1344 = vsub.s32 4, %v1343
        %v1345 = vrot.slane %v906, %v1344
        %1347 = vbcast.lane.b32.xlu0 %v1345, 256
        %v1348 = vpop.permute.xlu0 %1347
        %s1350 = sor.u32 256, 8
        %1351 = vbcast.lane.b32.xlu0 %v1345, %s1350
        %v1352 = vpop.permute.xlu0 %1351
        %v1353 = vlaneseq
        %v1354 = vshrl.u32 %v1353, 7
        %v1355 = vsub.s32 5, %v1354
        %v1356 = vrot.slane %v906, %v1355
        %1358 = vbcast.lane.b32.xlu0 %v1356, 256
        %v1359 = vpop.permute.xlu0 %1358
        %s1361 = sor.u32 256, 8
        %1362 = vbcast.lane.b32.xlu0 %v1356, %s1361
        %v1363 = vpop.permute.xlu0 %1362
        %v1364 = vlaneseq
        %v1365 = vshrl.u32 %v1364, 7
        %v1366 = vsub.s32 6, %v1365
        %v1367 = vrot.slane %v906, %v1366
        %1369 = vbcast.lane.b32.xlu0 %v1367, 256
        %v1370 = vpop.permute.xlu0 %1369
        %s1372 = sor.u32 256, 8
        %1373 = vbcast.lane.b32.xlu0 %v1367, %s1372
        %v1374 = vpop.permute.xlu0 %1373
        %v1375 = vlaneseq
        %v1376 = vshrl.u32 %v1375, 7
        %v1377 = vsub.s32 7, %v1376
        %v1378 = vrot.slane %v906, %v1377
        %1380 = vbcast.lane.b32.xlu0 %v1378, 256
        %v1381 = vpop.permute.xlu0 %1380
        %s1383 = sor.u32 256, 8
        %1384 = vbcast.lane.b32.xlu0 %v1378, %s1383
        %v1385 = vpop.permute.xlu0 %1384
        %v1386 = vmul.f32 %v1304, %v1282
        %v1387 = vmul.f32 %v1308, %v1283
        %v1388 = vmul.f32 %v1315, %v1284
        %v1389 = vmul.f32 %v1319, %v1285
        %v1390 = vmul.f32 %v1326, %v1286
        %v1391 = vmul.f32 %v1330, %v1287
        %v1392 = vmul.f32 %v1337, %v1288
        %v1393 = vmul.f32 %v1341, %v1289
        %v1394 = vmul.f32 %v1348, %v1290
        %v1395 = vmul.f32 %v1352, %v1291
        %v1396 = vmul.f32 %v1359, %v1292
        %v1397 = vmul.f32 %v1363, %v1293
        %v1398 = vmul.f32 %v1370, %v1294
        %v1399 = vmul.f32 %v1374, %v1295
        %v1400 = vmul.f32 %v1381, %v1296
        %v1401 = vmul.f32 %v1385, %v1297
        %vm1402 = vcmask 64512
        %v1403 = vsel %vm1402, %v1386, 0.0
        %v1404 = vsel %vm1402, %v1387, 0.0
        %v1405 = vadd.f32 %v1403, %v1404
        %v1406 = vrot.slane %v1405, 4
        %v1407 = vadd.f32 %v1405, %v1406
        %v1408 = vrot.slane %v1407, 2
        %v1409 = vadd.f32 %v1407, %v1408
        %v1410 = vrot.slane %v1409, 1
        %v1411 = vadd.f32 %v1409, %v1410
        %v1412 = vsel %vm1402, %v1388, 0.0
        %v1413 = vsel %vm1402, %v1389, 0.0
        %v1414 = vadd.f32 %v1412, %v1413
        %v1415 = vrot.slane %v1414, 4
        %v1416 = vadd.f32 %v1414, %v1415
        %v1417 = vrot.slane %v1416, 2
        %v1418 = vadd.f32 %v1416, %v1417
        %v1419 = vrot.slane %v1418, 1
        %v1420 = vadd.f32 %v1418, %v1419
        %v1421 = vsel %vm1402, %v1390, 0.0
        %v1422 = vsel %vm1402, %v1391, 0.0
        %v1423 = vadd.f32 %v1421, %v1422
        %v1424 = vrot.slane %v1423, 4
        %v1425 = vadd.f32 %v1423, %v1424
        %v1426 = vrot.slane %v1425, 2
        %v1427 = vadd.f32 %v1425, %v1426
        %v1428 = vrot.slane %v1427, 1
        %v1429 = vadd.f32 %v1427, %v1428
        %v1430 = vsel %vm1402, %v1392, 0.0
        %v1431 = vsel %vm1402, %v1393, 0.0
        %v1432 = vadd.f32 %v1430, %v1431
        %v1433 = vrot.slane %v1432, 4
        %v1434 = vadd.f32 %v1432, %v1433
        %v1435 = vrot.slane %v1434, 2
        %v1436 = vadd.f32 %v1434, %v1435
        %v1437 = vrot.slane %v1436, 1
        %v1438 = vadd.f32 %v1436, %v1437
        %v1439 = vsel %vm1402, %v1394, 0.0
        %v1440 = vsel %vm1402, %v1395, 0.0
        %v1441 = vadd.f32 %v1439, %v1440
        %v1442 = vrot.slane %v1441, 4
        %v1443 = vadd.f32 %v1441, %v1442
        %v1444 = vrot.slane %v1443, 2
        %v1445 = vadd.f32 %v1443, %v1444
        %v1446 = vrot.slane %v1445, 1
        %v1447 = vadd.f32 %v1445, %v1446
        %v1448 = vsel %vm1402, %v1396, 0.0
        %v1449 = vsel %vm1402, %v1397, 0.0
        %v1450 = vadd.f32 %v1448, %v1449
        %v1451 = vrot.slane %v1450, 4
        %v1452 = vadd.f32 %v1450, %v1451
        %v1453 = vrot.slane %v1452, 2
        %v1454 = vadd.f32 %v1452, %v1453
        %v1455 = vrot.slane %v1454, 1
        %v1456 = vadd.f32 %v1454, %v1455
        %v1457 = vsel %vm1402, %v1398, 0.0
        %v1458 = vsel %vm1402, %v1399, 0.0
        %v1459 = vadd.f32 %v1457, %v1458
        %v1460 = vrot.slane %v1459, 4
        %v1461 = vadd.f32 %v1459, %v1460
        %v1462 = vrot.slane %v1461, 2
        %v1463 = vadd.f32 %v1461, %v1462
        %v1464 = vrot.slane %v1463, 1
        %v1465 = vadd.f32 %v1463, %v1464
        %v1466 = vsel %vm1402, %v1400, 0.0
        %v1467 = vsel %vm1402, %v1401, 0.0
        %v1468 = vadd.f32 %v1466, %v1467
        %v1469 = vrot.slane %v1468, 4
        %v1470 = vadd.f32 %v1468, %v1469
        %v1471 = vrot.slane %v1470, 2
        %v1472 = vadd.f32 %v1470, %v1471
        %v1473 = vrot.slane %v1472, 1
        %v1474 = vadd.f32 %v1472, %v1473
        %v1475 = vld [vmem:[#allocation4 + $0x8] sm:$0xff]
        %v1476 = vmul.f32 %v1253, %v1475
        %vm1485 = vcmask 1041409
        %v1486 = vsel %vm1485, %v1420, %v1411
        %vm1487 = vcmask 1042434
        %v1488 = vsel %vm1487, %v1429, %v1486
        %vm1489 = vcmask 1043459
        %v1490 = vsel %vm1489, %v1438, %v1488
        %vm1491 = vcmask 1044484
        %v1492 = vsel %vm1491, %v1447, %v1490
        %vm1493 = vcmask 1045509
        %v1494 = vsel %vm1493, %v1456, %v1492
        %vm1495 = vcmask 1046534
        %v1496 = vsel %vm1495, %v1465, %v1494
        %vm1497 = vcmask 1047559
        %v1498 = vsel %vm1497, %v1474, %v1496
        %v1500 = vadd.f32 %v1476, %v1498
        %1501 = vst.msk [vmem:[#allocation4 + $0x8] sm:$0xff] %vm1402, %v1500
        %v1502 = vlaneseq
        %v1503 = vshrl.u32 %v1502, 7
        %v1504 = vsub.s32 0, %v1503
        %v1505 = vrot.slane %v908, %v1504
        %1507 = vbcast.lane.b32.xlu0 %v1505, 256
        %v1508 = vpop.permute.xlu0 %1507
        %s1510 = sor.u32 256, 8
        %1511 = vbcast.lane.b32.xlu0 %v1505, %s1510
        %v1512 = vpop.permute.xlu0 %1511
        %v1513 = vlaneseq
        %v1514 = vshrl.u32 %v1513, 7
        %v1515 = vsub.s32 1, %v1514
        %v1516 = vrot.slane %v908, %v1515
        %1518 = vbcast.lane.b32.xlu0 %v1516, 256
        %v1519 = vpop.permute.xlu0 %1518
        %s1521 = sor.u32 256, 8
        %1522 = vbcast.lane.b32.xlu0 %v1516, %s1521
        %v1523 = vpop.permute.xlu0 %1522
        %v1524 = vlaneseq
        %v1525 = vshrl.u32 %v1524, 7
        %v1526 = vsub.s32 2, %v1525
        %v1527 = vrot.slane %v908, %v1526
        %1529 = vbcast.lane.b32.xlu0 %v1527, 256
        %v1530 = vpop.permute.xlu0 %1529
        %s1532 = sor.u32 256, 8
        %1533 = vbcast.lane.b32.xlu0 %v1527, %s1532
        %v1534 = vpop.permute.xlu0 %1533
        %v1535 = vlaneseq
        %v1536 = vshrl.u32 %v1535, 7
        %v1537 = vsub.s32 3, %v1536
        %v1538 = vrot.slane %v908, %v1537
        %1540 = vbcast.lane.b32.xlu0 %v1538, 256
        %v1541 = vpop.permute.xlu0 %1540
        %s1543 = sor.u32 256, 8
        %1544 = vbcast.lane.b32.xlu0 %v1538, %s1543
        %v1545 = vpop.permute.xlu0 %1544
        %v1546 = vlaneseq
        %v1547 = vshrl.u32 %v1546, 7
        %v1548 = vsub.s32 4, %v1547
        %v1549 = vrot.slane %v908, %v1548
        %1551 = vbcast.lane.b32.xlu0 %v1549, 256
        %v1552 = vpop.permute.xlu0 %1551
        %s1554 = sor.u32 256, 8
        %1555 = vbcast.lane.b32.xlu0 %v1549, %s1554
        %v1556 = vpop.permute.xlu0 %1555
        %v1557 = vlaneseq
        %v1558 = vshrl.u32 %v1557, 7
        %v1559 = vsub.s32 5, %v1558
        %v1560 = vrot.slane %v908, %v1559
        %1562 = vbcast.lane.b32.xlu0 %v1560, 256
        %v1563 = vpop.permute.xlu0 %1562
        %s1565 = sor.u32 256, 8
        %1566 = vbcast.lane.b32.xlu0 %v1560, %s1565
        %v1567 = vpop.permute.xlu0 %1566
        %v1568 = vlaneseq
        %v1569 = vshrl.u32 %v1568, 7
        %v1570 = vsub.s32 6, %v1569
        %v1571 = vrot.slane %v908, %v1570
        %1573 = vbcast.lane.b32.xlu0 %v1571, 256
        %v1574 = vpop.permute.xlu0 %1573
        %s1576 = sor.u32 256, 8
        %1577 = vbcast.lane.b32.xlu0 %v1571, %s1576
        %v1578 = vpop.permute.xlu0 %1577
        %v1579 = vlaneseq
        %v1580 = vshrl.u32 %v1579, 7
        %v1581 = vsub.s32 7, %v1580
        %v1582 = vrot.slane %v908, %v1581
        %1584 = vbcast.lane.b32.xlu0 %v1582, 256
        %v1585 = vpop.permute.xlu0 %1584
        %s1587 = sor.u32 256, 8
        %1588 = vbcast.lane.b32.xlu0 %v1582, %s1587
        %v1589 = vpop.permute.xlu0 %1588
        %v1590 = vmul.f32 %v1508, %v1282
        %v1591 = vmul.f32 %v1512, %v1283
        %v1592 = vmul.f32 %v1519, %v1284
        %v1593 = vmul.f32 %v1523, %v1285
        %v1594 = vmul.f32 %v1530, %v1286
        %v1595 = vmul.f32 %v1534, %v1287
        %v1596 = vmul.f32 %v1541, %v1288
        %v1597 = vmul.f32 %v1545, %v1289
        %v1598 = vmul.f32 %v1552, %v1290
        %v1599 = vmul.f32 %v1556, %v1291
        %v1600 = vmul.f32 %v1563, %v1292
        %v1601 = vmul.f32 %v1567, %v1293
        %v1602 = vmul.f32 %v1574, %v1294
        %v1603 = vmul.f32 %v1578, %v1295
        %v1604 = vmul.f32 %v1585, %v1296
        %v1605 = vmul.f32 %v1589, %v1297
        %v1606 = vsel %vm1402, %v1590, 0.0
        %v1607 = vsel %vm1402, %v1591, 0.0
        %v1608 = vadd.f32 %v1606, %v1607
        %v1609 = vrot.slane %v1608, 4
        %v1610 = vadd.f32 %v1608, %v1609
        %v1611 = vrot.slane %v1610, 2
        %v1612 = vadd.f32 %v1610, %v1611
        %v1613 = vrot.slane %v1612, 1
        %v1614 = vadd.f32 %v1612, %v1613
        %v1615 = vsel %vm1402, %v1592, 0.0
        %v1616 = vsel %vm1402, %v1593, 0.0
        %v1617 = vadd.f32 %v1615, %v1616
        %v1618 = vrot.slane %v1617, 4
        %v1619 = vadd.f32 %v1617, %v1618
        %v1620 = vrot.slane %v1619, 2
        %v1621 = vadd.f32 %v1619, %v1620
        %v1622 = vrot.slane %v1621, 1
        %v1623 = vadd.f32 %v1621, %v1622
        %v1624 = vsel %vm1402, %v1594, 0.0
        %v1625 = vsel %vm1402, %v1595, 0.0
        %v1626 = vadd.f32 %v1624, %v1625
        %v1627 = vrot.slane %v1626, 4
        %v1628 = vadd.f32 %v1626, %v1627
        %v1629 = vrot.slane %v1628, 2
        %v1630 = vadd.f32 %v1628, %v1629
        %v1631 = vrot.slane %v1630, 1
        %v1632 = vadd.f32 %v1630, %v1631
        %v1633 = vsel %vm1402, %v1596, 0.0
        %v1634 = vsel %vm1402, %v1597, 0.0
        %v1635 = vadd.f32 %v1633, %v1634
        %v1636 = vrot.slane %v1635, 4
        %v1637 = vadd.f32 %v1635, %v1636
        %v1638 = vrot.slane %v1637, 2
        %v1639 = vadd.f32 %v1637, %v1638
        %v1640 = vrot.slane %v1639, 1
        %v1641 = vadd.f32 %v1639, %v1640
        %v1642 = vsel %vm1402, %v1598, 0.0
        %v1643 = vsel %vm1402, %v1599, 0.0
        %v1644 = vadd.f32 %v1642, %v1643
        %v1645 = vrot.slane %v1644, 4
        %v1646 = vadd.f32 %v1644, %v1645
        %v1647 = vrot.slane %v1646, 2
        %v1648 = vadd.f32 %v1646, %v1647
        %v1649 = vrot.slane %v1648, 1
        %v1650 = vadd.f32 %v1648, %v1649
        %v1651 = vsel %vm1402, %v1600, 0.0
        %v1652 = vsel %vm1402, %v1601, 0.0
        %v1653 = vadd.f32 %v1651, %v1652
        %v1654 = vrot.slane %v1653, 4
        %v1655 = vadd.f32 %v1653, %v1654
        %v1656 = vrot.slane %v1655, 2
        %v1657 = vadd.f32 %v1655, %v1656
        %v1658 = vrot.slane %v1657, 1
        %v1659 = vadd.f32 %v1657, %v1658
        %v1660 = vsel %vm1402, %v1602, 0.0
        %v1661 = vsel %vm1402, %v1603, 0.0
        %v1662 = vadd.f32 %v1660, %v1661
        %v1663 = vrot.slane %v1662, 4
        %v1664 = vadd.f32 %v1662, %v1663
        %v1665 = vrot.slane %v1664, 2
        %v1666 = vadd.f32 %v1664, %v1665
        %v1667 = vrot.slane %v1666, 1
        %v1668 = vadd.f32 %v1666, %v1667
        %v1669 = vsel %vm1402, %v1604, 0.0
        %v1670 = vsel %vm1402, %v1605, 0.0
        %v1671 = vadd.f32 %v1669, %v1670
        %v1672 = vrot.slane %v1671, 4
        %v1673 = vadd.f32 %v1671, %v1672
        %v1674 = vrot.slane %v1673, 2
        %v1675 = vadd.f32 %v1673, %v1674
        %v1676 = vrot.slane %v1675, 1
        %v1677 = vadd.f32 %v1675, %v1676
        %s1678 = scalar_lea.vmem [#allocation4], 16
        %v1679 = vld [vmem:[%s1678 + $0x8] sm:$0xff]
        %v1680 = vmul.f32 %v1258, %v1679
        %v1689 = vsel %vm1485, %v1623, %v1614
        %v1690 = vsel %vm1487, %v1632, %v1689
        %v1691 = vsel %vm1489, %v1641, %v1690
        %v1692 = vsel %vm1491, %v1650, %v1691
        %v1693 = vsel %vm1493, %v1659, %v1692
        %v1694 = vsel %vm1495, %v1668, %v1693
        %v1695 = vsel %vm1497, %v1677, %v1694
        %v1697 = vadd.f32 %v1680, %v1695
        %1698 = vst.msk [vmem:[%s1678 + $0x8] sm:$0xff] %vm1402, %v1697
        %v1699 = vlaneseq
        %v1700 = vshrl.u32 %v1699, 7
        %v1701 = vsub.s32 0, %v1700
        %v1702 = vrot.slane %v910, %v1701
        %1704 = vbcast.lane.b32.xlu0 %v1702, 256
        %v1705 = vpop.permute.xlu0 %1704
        %s1707 = sor.u32 256, 8
        %1708 = vbcast.lane.b32.xlu0 %v1702, %s1707
        %v1709 = vpop.permute.xlu0 %1708
        %v1710 = vlaneseq
        %v1711 = vshrl.u32 %v1710, 7
        %v1712 = vsub.s32 1, %v1711
        %v1713 = vrot.slane %v910, %v1712
        %1715 = vbcast.lane.b32.xlu0 %v1713, 256
        %v1716 = vpop.permute.xlu0 %1715
        %s1718 = sor.u32 256, 8
        %1719 = vbcast.lane.b32.xlu0 %v1713, %s1718
        %v1720 = vpop.permute.xlu0 %1719
        %v1721 = vlaneseq
        %v1722 = vshrl.u32 %v1721, 7
        %v1723 = vsub.s32 2, %v1722
        %v1724 = vrot.slane %v910, %v1723
        %1726 = vbcast.lane.b32.xlu0 %v1724, 256
        %v1727 = vpop.permute.xlu0 %1726
        %s1729 = sor.u32 256, 8
        %1730 = vbcast.lane.b32.xlu0 %v1724, %s1729
        %v1731 = vpop.permute.xlu0 %1730
        %v1732 = vlaneseq
        %v1733 = vshrl.u32 %v1732, 7
        %v1734 = vsub.s32 3, %v1733
        %v1735 = vrot.slane %v910, %v1734
        %1737 = vbcast.lane.b32.xlu0 %v1735, 256
        %v1738 = vpop.permute.xlu0 %1737
        %s1740 = sor.u32 256, 8
        %1741 = vbcast.lane.b32.xlu0 %v1735, %s1740
        %v1742 = vpop.permute.xlu0 %1741
        %v1743 = vlaneseq
        %v1744 = vshrl.u32 %v1743, 7
        %v1745 = vsub.s32 4, %v1744
        %v1746 = vrot.slane %v910, %v1745
        %1748 = vbcast.lane.b32.xlu0 %v1746, 256
        %v1749 = vpop.permute.xlu0 %1748
        %s1751 = sor.u32 256, 8
        %1752 = vbcast.lane.b32.xlu0 %v1746, %s1751
        %v1753 = vpop.permute.xlu0 %1752
        %v1754 = vlaneseq
        %v1755 = vshrl.u32 %v1754, 7
        %v1756 = vsub.s32 5, %v1755
        %v1757 = vrot.slane %v910, %v1756
        %1759 = vbcast.lane.b32.xlu0 %v1757, 256
        %v1760 = vpop.permute.xlu0 %1759
        %s1762 = sor.u32 256, 8
        %1763 = vbcast.lane.b32.xlu0 %v1757, %s1762
        %v1764 = vpop.permute.xlu0 %1763
        %v1765 = vlaneseq
        %v1766 = vshrl.u32 %v1765, 7
        %v1767 = vsub.s32 6, %v1766
        %v1768 = vrot.slane %v910, %v1767
        %1770 = vbcast.lane.b32.xlu0 %v1768, 256
        %v1771 = vpop.permute.xlu0 %1770
        %s1773 = sor.u32 256, 8
        %1774 = vbcast.lane.b32.xlu0 %v1768, %s1773
        %v1775 = vpop.permute.xlu0 %1774
        %v1776 = vlaneseq
        %v1777 = vshrl.u32 %v1776, 7
        %v1778 = vsub.s32 7, %v1777
        %v1779 = vrot.slane %v910, %v1778
        %1781 = vbcast.lane.b32.xlu0 %v1779, 256
        %v1782 = vpop.permute.xlu0 %1781
        %s1784 = sor.u32 256, 8
        %1785 = vbcast.lane.b32.xlu0 %v1779, %s1784
        %v1786 = vpop.permute.xlu0 %1785
        %v1787 = vmul.f32 %v1705, %v1282
        %v1788 = vmul.f32 %v1709, %v1283
        %v1789 = vmul.f32 %v1716, %v1284
        %v1790 = vmul.f32 %v1720, %v1285
        %v1791 = vmul.f32 %v1727, %v1286
        %v1792 = vmul.f32 %v1731, %v1287
        %v1793 = vmul.f32 %v1738, %v1288
        %v1794 = vmul.f32 %v1742, %v1289
        %v1795 = vmul.f32 %v1749, %v1290
        %v1796 = vmul.f32 %v1753, %v1291
        %v1797 = vmul.f32 %v1760, %v1292
        %v1798 = vmul.f32 %v1764, %v1293
        %v1799 = vmul.f32 %v1771, %v1294
        %v1800 = vmul.f32 %v1775, %v1295
        %v1801 = vmul.f32 %v1782, %v1296
        %v1802 = vmul.f32 %v1786, %v1297
        %v1803 = vsel %vm1402, %v1787, 0.0
        %v1804 = vsel %vm1402, %v1788, 0.0
        %v1805 = vadd.f32 %v1803, %v1804
        %v1806 = vrot.slane %v1805, 4
        %v1807 = vadd.f32 %v1805, %v1806
        %v1808 = vrot.slane %v1807, 2
        %v1809 = vadd.f32 %v1807, %v1808
        %v1810 = vrot.slane %v1809, 1
        %v1811 = vadd.f32 %v1809, %v1810
        %v1812 = vsel %vm1402, %v1789, 0.0
        %v1813 = vsel %vm1402, %v1790, 0.0
        %v1814 = vadd.f32 %v1812, %v1813
        %v1815 = vrot.slane %v1814, 4
        %v1816 = vadd.f32 %v1814, %v1815
        %v1817 = vrot.slane %v1816, 2
        %v1818 = vadd.f32 %v1816, %v1817
        %v1819 = vrot.slane %v1818, 1
        %v1820 = vadd.f32 %v1818, %v1819
        %v1821 = vsel %vm1402, %v1791, 0.0
        %v1822 = vsel %vm1402, %v1792, 0.0
        %v1823 = vadd.f32 %v1821, %v1822
        %v1824 = vrot.slane %v1823, 4
        %v1825 = vadd.f32 %v1823, %v1824
        %v1826 = vrot.slane %v1825, 2
        %v1827 = vadd.f32 %v1825, %v1826
        %v1828 = vrot.slane %v1827, 1
        %v1829 = vadd.f32 %v1827, %v1828
        %v1830 = vsel %vm1402, %v1793, 0.0
        %v1831 = vsel %vm1402, %v1794, 0.0
        %v1832 = vadd.f32 %v1830, %v1831
        %v1833 = vrot.slane %v1832, 4
        %v1834 = vadd.f32 %v1832, %v1833
        %v1835 = vrot.slane %v1834, 2
        %v1836 = vadd.f32 %v1834, %v1835
        %v1837 = vrot.slane %v1836, 1
        %v1838 = vadd.f32 %v1836, %v1837
        %v1839 = vsel %vm1402, %v1795, 0.0
        %v1840 = vsel %vm1402, %v1796, 0.0
        %v1841 = vadd.f32 %v1839, %v1840
        %v1842 = vrot.slane %v1841, 4
        %v1843 = vadd.f32 %v1841, %v1842
        %v1844 = vrot.slane %v1843, 2
        %v1845 = vadd.f32 %v1843, %v1844
        %v1846 = vrot.slane %v1845, 1
        %v1847 = vadd.f32 %v1845, %v1846
        %v1848 = vsel %vm1402, %v1797, 0.0
        %v1849 = vsel %vm1402, %v1798, 0.0
        %v1850 = vadd.f32 %v1848, %v1849
        %v1851 = vrot.slane %v1850, 4
        %v1852 = vadd.f32 %v1850, %v1851
        %v1853 = vrot.slane %v1852, 2
        %v1854 = vadd.f32 %v1852, %v1853
        %v1855 = vrot.slane %v1854, 1
        %v1856 = vadd.f32 %v1854, %v1855
        %v1857 = vsel %vm1402, %v1799, 0.0
        %v1858 = vsel %vm1402, %v1800, 0.0
        %v1859 = vadd.f32 %v1857, %v1858
        %v1860 = vrot.slane %v1859, 4
        %v1861 = vadd.f32 %v1859, %v1860
        %v1862 = vrot.slane %v1861, 2
        %v1863 = vadd.f32 %v1861, %v1862
        %v1864 = vrot.slane %v1863, 1
        %v1865 = vadd.f32 %v1863, %v1864
        %v1866 = vsel %vm1402, %v1801, 0.0
        %v1867 = vsel %vm1402, %v1802, 0.0
        %v1868 = vadd.f32 %v1866, %v1867
        %v1869 = vrot.slane %v1868, 4
        %v1870 = vadd.f32 %v1868, %v1869
        %v1871 = vrot.slane %v1870, 2
        %v1872 = vadd.f32 %v1870, %v1871
        %v1873 = vrot.slane %v1872, 1
        %v1874 = vadd.f32 %v1872, %v1873
        %s1875 = scalar_lea.vmem [#allocation4], 32
        %v1876 = vld [vmem:[%s1875 + $0x8] sm:$0xff]
        %v1877 = vmul.f32 %v1263, %v1876
        %v1886 = vsel %vm1485, %v1820, %v1811
        %v1887 = vsel %vm1487, %v1829, %v1886
        %v1888 = vsel %vm1489, %v1838, %v1887
        %v1889 = vsel %vm1491, %v1847, %v1888
        %v1890 = vsel %vm1493, %v1856, %v1889
        %v1891 = vsel %vm1495, %v1865, %v1890
        %v1892 = vsel %vm1497, %v1874, %v1891
        %v1894 = vadd.f32 %v1877, %v1892
        %1895 = vst.msk [vmem:[%s1875 + $0x8] sm:$0xff] %vm1402, %v1894
        %v1896 = vlaneseq
        %v1897 = vshrl.u32 %v1896, 7
        %v1898 = vsub.s32 0, %v1897
        %v1899 = vrot.slane %v912, %v1898
        %1901 = vbcast.lane.b32.xlu0 %v1899, 256
        %v1902 = vpop.permute.xlu0 %1901
        %s1904 = sor.u32 256, 8
        %1905 = vbcast.lane.b32.xlu0 %v1899, %s1904
        %v1906 = vpop.permute.xlu0 %1905
        %v1907 = vlaneseq
        %v1908 = vshrl.u32 %v1907, 7
        %v1909 = vsub.s32 1, %v1908
        %v1910 = vrot.slane %v912, %v1909
        %1912 = vbcast.lane.b32.xlu0 %v1910, 256
        %v1913 = vpop.permute.xlu0 %1912
        %s1915 = sor.u32 256, 8
        %1916 = vbcast.lane.b32.xlu0 %v1910, %s1915
        %v1917 = vpop.permute.xlu0 %1916
        %v1918 = vlaneseq
        %v1919 = vshrl.u32 %v1918, 7
        %v1920 = vsub.s32 2, %v1919
        %v1921 = vrot.slane %v912, %v1920
        %1923 = vbcast.lane.b32.xlu0 %v1921, 256
        %v1924 = vpop.permute.xlu0 %1923
        %s1926 = sor.u32 256, 8
        %1927 = vbcast.lane.b32.xlu0 %v1921, %s1926
        %v1928 = vpop.permute.xlu0 %1927
        %v1929 = vlaneseq
        %v1930 = vshrl.u32 %v1929, 7
        %v1931 = vsub.s32 3, %v1930
        %v1932 = vrot.slane %v912, %v1931
        %1934 = vbcast.lane.b32.xlu0 %v1932, 256
        %v1935 = vpop.permute.xlu0 %1934
        %s1937 = sor.u32 256, 8
        %1938 = vbcast.lane.b32.xlu0 %v1932, %s1937
        %v1939 = vpop.permute.xlu0 %1938
        %v1940 = vlaneseq
        %v1941 = vshrl.u32 %v1940, 7
        %v1942 = vsub.s32 4, %v1941
        %v1943 = vrot.slane %v912, %v1942
        %1945 = vbcast.lane.b32.xlu0 %v1943, 256
        %v1946 = vpop.permute.xlu0 %1945
        %s1948 = sor.u32 256, 8
        %1949 = vbcast.lane.b32.xlu0 %v1943, %s1948
        %v1950 = vpop.permute.xlu0 %1949
        %v1951 = vlaneseq
        %v1952 = vshrl.u32 %v1951, 7
        %v1953 = vsub.s32 5, %v1952
        %v1954 = vrot.slane %v912, %v1953
        %1956 = vbcast.lane.b32.xlu0 %v1954, 256
        %v1957 = vpop.permute.xlu0 %1956
        %s1959 = sor.u32 256, 8
        %1960 = vbcast.lane.b32.xlu0 %v1954, %s1959
        %v1961 = vpop.permute.xlu0 %1960
        %v1962 = vlaneseq
        %v1963 = vshrl.u32 %v1962, 7
        %v1964 = vsub.s32 6, %v1963
        %v1965 = vrot.slane %v912, %v1964
        %1967 = vbcast.lane.b32.xlu0 %v1965, 256
        %v1968 = vpop.permute.xlu0 %1967
        %s1970 = sor.u32 256, 8
        %1971 = vbcast.lane.b32.xlu0 %v1965, %s1970
        %v1972 = vpop.permute.xlu0 %1971
        %v1973 = vlaneseq
        %v1974 = vshrl.u32 %v1973, 7
        %v1975 = vsub.s32 7, %v1974
        %v1976 = vrot.slane %v912, %v1975
        %1978 = vbcast.lane.b32.xlu0 %v1976, 256
        %v1979 = vpop.permute.xlu0 %1978
        %s1981 = sor.u32 256, 8
        %1982 = vbcast.lane.b32.xlu0 %v1976, %s1981
        %v1983 = vpop.permute.xlu0 %1982
        %v1984 = vmul.f32 %v1902, %v1282
        %v1985 = vmul.f32 %v1906, %v1283
        %v1986 = vmul.f32 %v1913, %v1284
        %v1987 = vmul.f32 %v1917, %v1285
        %v1988 = vmul.f32 %v1924, %v1286
        %v1989 = vmul.f32 %v1928, %v1287
        %v1990 = vmul.f32 %v1935, %v1288
        %v1991 = vmul.f32 %v1939, %v1289
        %v1992 = vmul.f32 %v1946, %v1290
        %v1993 = vmul.f32 %v1950, %v1291
        %v1994 = vmul.f32 %v1957, %v1292
        %v1995 = vmul.f32 %v1961, %v1293
        %v1996 = vmul.f32 %v1968, %v1294
        %v1997 = vmul.f32 %v1972, %v1295
        %v1998 = vmul.f32 %v1979, %v1296
        %v1999 = vmul.f32 %v1983, %v1297
        %v2000 = vsel %vm1402, %v1984, 0.0
        %v2001 = vsel %vm1402, %v1985, 0.0
        %v2002 = vadd.f32 %v2000, %v2001
        %v2003 = vrot.slane %v2002, 4
        %v2004 = vadd.f32 %v2002, %v2003
        %v2005 = vrot.slane %v2004, 2
        %v2006 = vadd.f32 %v2004, %v2005
        %v2007 = vrot.slane %v2006, 1
        %v2008 = vadd.f32 %v2006, %v2007
        %v2009 = vsel %vm1402, %v1986, 0.0
        %v2010 = vsel %vm1402, %v1987, 0.0
        %v2011 = vadd.f32 %v2009, %v2010
        %v2012 = vrot.slane %v2011, 4
        %v2013 = vadd.f32 %v2011, %v2012
        %v2014 = vrot.slane %v2013, 2
        %v2015 = vadd.f32 %v2013, %v2014
        %v2016 = vrot.slane %v2015, 1
        %v2017 = vadd.f32 %v2015, %v2016
        %v2018 = vsel %vm1402, %v1988, 0.0
        %v2019 = vsel %vm1402, %v1989, 0.0
        %v2020 = vadd.f32 %v2018, %v2019
        %v2021 = vrot.slane %v2020, 4
        %v2022 = vadd.f32 %v2020, %v2021
        %v2023 = vrot.slane %v2022, 2
        %v2024 = vadd.f32 %v2022, %v2023
        %v2025 = vrot.slane %v2024, 1
        %v2026 = vadd.f32 %v2024, %v2025
        %v2027 = vsel %vm1402, %v1990, 0.0
        %v2028 = vsel %vm1402, %v1991, 0.0
        %v2029 = vadd.f32 %v2027, %v2028
        %v2030 = vrot.slane %v2029, 4
        %v2031 = vadd.f32 %v2029, %v2030
        %v2032 = vrot.slane %v2031, 2
        %v2033 = vadd.f32 %v2031, %v2032
        %v2034 = vrot.slane %v2033, 1
        %v2035 = vadd.f32 %v2033, %v2034
        %v2036 = vsel %vm1402, %v1992, 0.0
        %v2037 = vsel %vm1402, %v1993, 0.0
        %v2038 = vadd.f32 %v2036, %v2037
        %v2039 = vrot.slane %v2038, 4
        %v2040 = vadd.f32 %v2038, %v2039
        %v2041 = vrot.slane %v2040, 2
        %v2042 = vadd.f32 %v2040, %v2041
        %v2043 = vrot.slane %v2042, 1
        %v2044 = vadd.f32 %v2042, %v2043
        %v2045 = vsel %vm1402, %v1994, 0.0
        %v2046 = vsel %vm1402, %v1995, 0.0
        %v2047 = vadd.f32 %v2045, %v2046
        %v2048 = vrot.slane %v2047, 4
        %v2049 = vadd.f32 %v2047, %v2048
        %v2050 = vrot.slane %v2049, 2
        %v2051 = vadd.f32 %v2049, %v2050
        %v2052 = vrot.slane %v2051, 1
        %v2053 = vadd.f32 %v2051, %v2052
        %v2054 = vsel %vm1402, %v1996, 0.0
        %v2055 = vsel %vm1402, %v1997, 0.0
        %v2056 = vadd.f32 %v2054, %v2055
        %v2057 = vrot.slane %v2056, 4
        %v2058 = vadd.f32 %v2056, %v2057
        %v2059 = vrot.slane %v2058, 2
        %v2060 = vadd.f32 %v2058, %v2059
        %v2061 = vrot.slane %v2060, 1
        %v2062 = vadd.f32 %v2060, %v2061
        %v2063 = vsel %vm1402, %v1998, 0.0
        %v2064 = vsel %vm1402, %v1999, 0.0
        %v2065 = vadd.f32 %v2063, %v2064
        %v2066 = vrot.slane %v2065, 4
        %v2067 = vadd.f32 %v2065, %v2066
        %v2068 = vrot.slane %v2067, 2
        %v2069 = vadd.f32 %v2067, %v2068
        %v2070 = vrot.slane %v2069, 1
        %v2071 = vadd.f32 %v2069, %v2070
        %s2072 = scalar_lea.vmem [#allocation4], 48
        %v2073 = vld [vmem:[%s2072 + $0x8] sm:$0xff]
        %v2074 = vmul.f32 %v1268, %v2073
        %v2083 = vsel %vm1485, %v2017, %v2008
        %v2084 = vsel %vm1487, %v2026, %v2083
        %v2085 = vsel %vm1489, %v2035, %v2084
        %v2086 = vsel %vm1491, %v2044, %v2085
        %v2087 = vsel %vm1493, %v2053, %v2086
        %v2088 = vsel %vm1495, %v2062, %v2087
        %v2089 = vsel %vm1497, %v2071, %v2088
        %v2091 = vadd.f32 %v2074, %v2089
        %2092 = vst.msk [vmem:[%s2072 + $0x8] sm:$0xff] %vm1402, %v2091
        // Predicated region
        $region121: #{tpu_custom_call.1} parent=107 // pred_check
          %p2093 = pneg %p494
        $region122: #{tpu_custom_call.1} parent=107 // pred_check_branch
          %2095 = sbr.rel (%p2093) target = $region124
        $region123: #{tpu_custom_call.1} parent=107 // pred_region
          %v2096 = vld [vmem:[#allocation3] sm:$0xff]
          %v2097 = vld [vmem:[#allocation3 + $0x8] sm:$0xff]
          %v2098 = vld [vmem:[#allocation3 + $0x10] sm:$0xff]
          %v2099 = vld [vmem:[#allocation3 + $0x18] sm:$0xff]
          %v2100 = vrcp.pop %v2096
          %v2101 = vrcp.pop %v2097
          %v2102 = vrcp.pop %v2098
          %v2103 = vrcp.pop %v2099
          %v2104 = vmul.f32 %v2096, %v2100
          %v2105 = vmul.f32 %v2097, %v2101
          %v2106 = vmul.f32 %v2098, %v2102
          %v2107 = vmul.f32 %v2099, %v2103
          %v2108 = vsub.f32 2.0, %v2104
          %v2109 = vsub.f32 2.0, %v2105
          %v2110 = vsub.f32 2.0, %v2106
          %v2111 = vsub.f32 2.0, %v2107
          %v2112 = vmul.f32 %v2100, %v2108
          %v2113 = vmul.f32 %v2101, %v2109
          %v2114 = vmul.f32 %v2102, %v2110
          %v2115 = vmul.f32 %v2103, %v2111
          %v2116 = vld [vmem:[#allocation4] sm:$0xff]
          %v2117 = vld [vmem:[#allocation4 + $0x8] sm:$0xff]
          %v2118 = vld [vmem:[#allocation4 + $0x10] sm:$0xff]
          %v2119 = vld [vmem:[#allocation4 + $0x18] sm:$0xff]
          %v2120 = vld [vmem:[#allocation4 + $0x20] sm:$0xff]
          %v2121 = vld [vmem:[#allocation4 + $0x28] sm:$0xff]
          %v2122 = vld [vmem:[#allocation4 + $0x30] sm:$0xff]
          %v2123 = vld [vmem:[#allocation4 + $0x38] sm:$0xff]
          %2125 = vset.pattern.permute.xlu0 0
          %2126 = vperm.xlu0 %2125, %v2112
          %v2127 = vpop.permute.xlu0 %2126
          %2130 = vset.pattern.permute.xlu0 0
          %2131 = vperm.xlu0 %2130, %v2113
          %v2132 = vpop.permute.xlu0 %2131
          %2135 = vset.pattern.permute.xlu0 0
          %2136 = vperm.xlu0 %2135, %v2114
          %v2137 = vpop.permute.xlu0 %2136
          %2140 = vset.pattern.permute.xlu0 0
          %2141 = vperm.xlu0 %2140, %v2115
          %v2142 = vpop.permute.xlu0 %2141
          %v2144 = vmul.f32 %v2116, %v2127
          %v2145 = vmul.f32 %v2117, %v2127
          %v2146 = vmul.f32 %v2118, %v2132
          %v2147 = vmul.f32 %v2119, %v2132
          %v2148 = vmul.f32 %v2120, %v2137
          %v2149 = vmul.f32 %v2121, %v2137
          %v2150 = vmul.f32 %v2122, %v2142
          %v2151 = vmul.f32 %v2123, %v2142
          %2152 = vst [vmem:[%s457] sm:$0xff] %v2144
          %2153 = vst [vmem:[%s457 + $0x8] sm:$0xff] %v2145
          %2154 = vst [vmem:[%s457 + $0x10] sm:$0xff] %v2146
          %2155 = vst [vmem:[%s457 + $0x18] sm:$0xff] %v2147
          %2156 = vst [vmem:[%s457 + $0x20] sm:$0xff] %v2148
          %2157 = vst [vmem:[%s457 + $0x28] sm:$0xff] %v2149
          %2158 = vst [vmem:[%s457 + $0x30] sm:$0xff] %v2150
          %2159 = vst [vmem:[%s457 + $0x38] sm:$0xff] %v2151
        $region124: #{tpu_custom_call.1} parent=107 // pred_fallthru
          _
        %s2160 = sand.u32 %s192, 1
        %s2161 = scalar_lea.sflag [#allocation8], %s2160
        %s2162 = sand.u32 %s192, 1
        %s2163 = smul.addr %s2162, 64
        %s2164 = scalar_lea.vmem [#allocation7], %s2163
        // Predicated region
        $region125: #{tpu_custom_call.1} parent=107 // pred_check
          %p2165 = pneg %p202
        $region126: #{tpu_custom_call.1} parent=107 // pred_check_branch
          %2167 = sbr.rel (%p2165) target = $region128
        $region127: #{tpu_custom_call.1} parent=107 // pred_region
          %s2169 = ssub.s32 1024, 1024
          %2170 = vsyncadd %s2161, %s2169
          %s2171 = smul.addr %s25, 2
          %s2172 = smul.addr %s24, 16
          %s2173 = sadd.s32 %s2171, %s2172
          %s2174 = smul.addr %s2173, 128
          %s2175 = scalar_lea.hbm %s5, %s2174
          %s2176 = sshll.u32 %s2164, 4
          %s2177 = int_to_ptr.vmem [resolvable:$true] %s2176
          %2182 = dma.vmem_to_hbm [thread:$0]  %s2177, 1024, %s2175, %s2161, 256, 512, 16
        $region128: #{tpu_custom_call.1} parent=107 // pred_fallthru
          _
      $region108: #{tpu_custom_call.1} parent=5 // pred_fallthru
        _
      %p2183 = scmp.le.s32.totalorder 2, %s14
      // Predicated region
      $region129: #{tpu_custom_call.1} parent=5 // pred_check
        %p2184 = pneg %p2183
      $region130: #{tpu_custom_call.1} parent=5 // pred_check_branch
        %2186 = sbr.rel (%p2184) target = $region132
      $region131: #{tpu_custom_call.1} parent=5 // pred_region
        %s2187 = ssub.s32 %s14, 2
        // Predicated region
        $region133: #{tpu_custom_call.1} parent=131 // pred_check
          %p2188 = pneg %p208
        $region134: #{tpu_custom_call.1} parent=131 // pred_check_branch
          %2190 = sbr.rel (%p2188) target = $region136
        $region135: #{tpu_custom_call.1} parent=131 // pred_region
          %s2191 = sand.u32 %s193, 1
          %s2192 = scalar_lea.sflag [#allocation8], %s2191
          %s2193 = sand.u32 %s193, 1
          %s2194 = smul.addr %s2193, 64
          %s2195 = scalar_lea.vmem [#allocation7], %s2194
          %2196 = dma.done %s2192, 1024
        $region136: #{tpu_custom_call.1} parent=131 // pred_fallthru
          _
      $region132: #{tpu_custom_call.1} parent=5 // pred_fallthru
        _
    $region6: #{tpu_custom_call.1} parent=1 // loop_footer
      %s18 = sadd.s32 1, %s14
    $region7: #{tpu_custom_call.1} parent=1 // loop_footer_branch
      %13 = sbr.rel target = $region3
    $region8: #{tpu_custom_call.1} parent=1 // loop_exit
      _
    %2197 = vsyncpa [#allocation8], 1
    %s2198 = scalar_lea.sflag [#allocation8], 1
    %2199 = vsyncpa %s2198, 1

</llo_original>
